<compile_context>
chip_gen: v5e
topology: v5e:2x2
jax: 0.10.0
libtpu: 0.0.40
codegen_flags: <defaults>
</compile_context>

<pallas_src>
import jax
import jax.numpy as jnp
from jax.experimental import pallas as pl
from jax.experimental.pallas import tpu as pltpu


def _attention_kernel(c_ref, v_ref, *refs):
    # c_ref : (L,)    SMEM   folded score biases   c_l = b_l . yw_l + yb_l
    # v_ref : (L, D)  VMEM   folded score weights  v_l = W_l^T @ yw_l
    # refs  : L input tiles (tn, D) followed by the output tile (tn, D)
    x_refs, o_ref = refs[:-1], refs[-1]
    L = len(x_refs)

    v = v_ref[...].astype(jnp.float32)                    # (L, D)

    # ---- per-view scalar scores (folded Linear(D,D) + Linear(D,1)) ----
    scores = []
    for l in range(L):                                    # L is a static int
        x_l = x_refs[l][...].astype(jnp.float32)          # (tn, D)
        s_l = jnp.sum(x_l * v[l][None, :], axis=-1, keepdims=True)  # (tn, 1)
        scores.append(s_l + c_ref[l])                     # scalar bias (SMEM)

    # ---- lane-dense softmax over the L scores ----
    # tanh bounds logits to [-1, 1] -> no max-subtraction needed for exp.
    s = jnp.concatenate(scores, axis=-1)                  # (tn, L)
    e = jnp.exp(jnp.tanh(s))                              # single EUP pass
    denom = jnp.sum(e, axis=-1, keepdims=True)            # (tn, 1)
    probs = e / denom                                     # exact divide

    # ---- weighted sum of the original views (re-read tiles, cast inline) ----
    out = probs[:, 0:1] * x_refs[0][...].astype(jnp.float32)
    for l in range(1, L):
        out = out + probs[:, l:l + 1] * x_refs[l][...].astype(jnp.float32)
    o_ref[...] = out.astype(o_ref.dtype)


def _round_up(x, m):
    return ((x + m - 1) // m) * m


def _round_down(x, m):
    return (x // m) * m


def attention_pallas(data_list, w, b, yw, yb, *, tn=1024):
    """data_list: list of L arrays [N, D]; w: [L, D, D] (nn.Linear [out, in]);
    b: [L, D]; yw: [L, D] (y_list[l].weight[0]); yb: [L]."""
    L = len(data_list)
    N, D = data_list[0].shape
    dtype = data_list[0].dtype
    itemsize = jnp.dtype(dtype).itemsize

    # Exact algebraic fold of the two Linears into per-view matvec + scalar.
    v = jnp.einsum('lod,lo->ld', w, yw).astype(jnp.float32)      # (L, D)
    c = (jnp.sum(b * yw, axis=-1) + yb).astype(jnp.float32)      # (L,)

    # Row tile: big (amortize ~0.35 us/step), multiple of 8 sublanes, capped
    # by (a) the VMEM working set of (L+1) double-buffered tiles and (b) N.
    workset_budget = 40 * 1024 * 1024
    per_row_bytes = 2 * (L + 1) * D * itemsize
    tn_vmem = max(8, _round_down(workset_budget // per_row_bytes, 8))
    tn = max(8, min(_round_up(tn, 8), tn_vmem, _round_up(N, 8)))
    grid = (pl.cdiv(N, tn),)

    needed = 2 * (L + 1) * tn * D * itemsize + 2 * L * D * 4
    vmem_limit = int(min(needed + 16 * 1024 * 1024, 56 * 1024 * 1024))

    x_specs = [pl.BlockSpec((tn, D), lambda i: (i, 0)) for _ in range(L)]

    out = pl.pallas_call(
        _attention_kernel,
        out_shape=jax.ShapeDtypeStruct((N, D), dtype),
        grid=grid,
        in_specs=[
            pl.BlockSpec(memory_space=pltpu.MemorySpace.SMEM),   # c (scalars)
            pl.BlockSpec((L, D), lambda i: (0, 0)),              # v (resident)
            *x_specs,                                            # L streamed views
        ],
        out_specs=pl.BlockSpec((tn, D), lambda i: (i, 0)),
        compiler_params=pltpu.CompilerParams(
            dimension_semantics=("parallel",),
            vmem_limit_bytes=vmem_limit,
        ),
    )(c, v, *data_list)
    return out


def attention_ref(data_list, w, b, yw, yb):
    """Pure-JAX reference mirroring the PyTorch combine_att."""
    L = len(data_list)
    cols = []
    for l in range(L):
        z = data_list[l] @ w[l].T + b[l]          # nn.Linear(D, D)
        s = z @ yw[l][:, None] + yb[l]            # nn.Linear(D, 1)
        cols.append(s)
    score = jnp.concatenate(cols, axis=-1)        # (N, L)
    score = jnp.tanh(score)
    score = jax.nn.softmax(score, axis=-1)
    data = jnp.stack(data_list, axis=1)           # (N, L, D)
    return jnp.sum(score[..., None] * data, axis=1)


if __name__ == "__main__":
    # Shapes implied by the module: cfg[-1] = D, length = L views, N rows.
    # N is not a multiple of 8/128 to exercise the partial-block path.
    L, N, D = 3, 250, 128
    key = jax.random.PRNGKey(0)
    k_data, k_w, k_b, k_yw, k_yb = jax.random.split(key, 5)

    data_list = [
        jax.random.normal(jax.random.fold_in(k_data, l), (N, D), jnp.float32)
        for l in range(L)
    ]
    w = 0.1 * jax.random.normal(k_w, (L, D, D), jnp.float32)
    b = 0.1 * jax.random.normal(k_b, (L, D), jnp.float32)
    yw = 0.1 * jax.random.normal(k_yw, (L, D), jnp.float32)
    yb = 0.1 * jax.random.normal(k_yb, (L,), jnp.float32)

    ref = attention_ref(data_list, w, b, yw, yb)

    # 1) default tiling (single block for this small N)
    out = jax.block_until_ready(attention_pallas(data_list, w, b, yw, yb))
    assert out.shape == (N, D)
    err = float(jnp.max(jnp.abs(out - ref)))
    assert jnp.allclose(out, ref, atol=1e-4, rtol=1e-4), \
        f"mismatch vs reference (max abs err {err})"

    # 2) small tile -> multi-step grid with a partial last block (tail path)
    out2 = jax.block_until_ready(attention_pallas(data_list, w, b, yw, yb, tn=128))
    err2 = float(jnp.max(jnp.abs(out2 - ref)))
    assert jnp.allclose(out2, ref, atol=1e-4, rtol=1e-4), \
        f"mismatch vs reference (tiled, max abs err {err2})"

    print("KERNEL_OK")
</pallas_src>

<mosaic_0001>
module attributes {stable_mosaic.version = 11 : i64} {
  func.func @_attention_kernel(%arg0: i32, %arg1: memref<3xf32, #tpu.memory_space<smem>>, %arg2: memref<3x128xf32, #tpu.memory_space<vmem>>, %arg3: memref<256x128xf32, #tpu.memory_space<vmem>>, %arg4: memref<256x128xf32, #tpu.memory_space<vmem>>, %arg5: memref<256x128xf32, #tpu.memory_space<vmem>>, %arg6: memref<256x128xf32, #tpu.memory_space<vmem>>) attributes {dimension_semantics = [#tpu.dimension_semantics<parallel>], iteration_bounds = array<i64: 1>, scalar_prefetch = 0 : i64, scratch_operands = 0 : i64, tpu.core_type = #tpu.core_type<tc>, window_params = [{transform_indices = @transform_0, window_bounds = array<i64: 3>}, {pipeline_mode = #tpu.pipeline_mode<synchronous>, transform_indices = @transform_1, window_bounds = array<i64: 3, 128>}, {transform_indices = @transform_2, window_bounds = array<i64: 256, 128>}, {transform_indices = @transform_3, window_bounds = array<i64: 256, 128>}, {transform_indices = @transform_4, window_bounds = array<i64: 256, 128>}, {transform_indices = @transform_5, window_bounds = array<i64: 256, 128>}]} {
    %c0 = arith.constant 0 : index
    %c0_0 = arith.constant 0 : index
    %0 = vector.load %arg2[%c0, %c0_0] : memref<3x128xf32, #tpu.memory_space<vmem>>, vector<3x128xf32>
    %c0_1 = arith.constant 0 : index
    %c0_2 = arith.constant 0 : index
    %1 = vector.load %arg3[%c0_1, %c0_2] : memref<256x128xf32, #tpu.memory_space<vmem>>, vector<256x128xf32>
    %2 = vector.extract_strided_slice %0 {offsets = [0, 0], sizes = [1, 128], strides = [1, 1]} : vector<3x128xf32> to vector<1x128xf32>
    %3 = vector.shape_cast %2 : vector<1x128xf32> to vector<128xf32>
    %4 = vector.shape_cast %3 : vector<128xf32> to vector<1x128xf32>
    %5 = vector.broadcast %4 : vector<1x128xf32> to vector<256x128xf32>
    %6 = arith.mulf %1, %5 : vector<256x128xf32>
    %cst = arith.constant dense<0.000000e+00> : vector<256xf32>
    %7 = vector.multi_reduction <add>, %6, %cst [1] : vector<256x128xf32> to vector<256xf32>
    %8 = vector.shape_cast %7 : vector<256xf32> to vector<256x1xf32>
    %c0_3 = arith.constant 0 : index
    %9 = memref.load %arg1[%c0_3] : memref<3xf32, #tpu.memory_space<smem>>
    %10 = vector.broadcast %9 : f32 to vector<256x1xf32>
    %11 = arith.addf %8, %10 : vector<256x1xf32>
    %c0_4 = arith.constant 0 : index
    %c0_5 = arith.constant 0 : index
    %12 = vector.load %arg4[%c0_4, %c0_5] : memref<256x128xf32, #tpu.memory_space<vmem>>, vector<256x128xf32>
    %13 = vector.extract_strided_slice %0 {offsets = [1, 0], sizes = [1, 128], strides = [1, 1]} : vector<3x128xf32> to vector<1x128xf32>
    %14 = vector.shape_cast %13 : vector<1x128xf32> to vector<128xf32>
    %15 = vector.shape_cast %14 : vector<128xf32> to vector<1x128xf32>
    %16 = vector.broadcast %15 : vector<1x128xf32> to vector<256x128xf32>
    %17 = arith.mulf %12, %16 : vector<256x128xf32>
    %cst_6 = arith.constant dense<0.000000e+00> : vector<256xf32>
    %18 = vector.multi_reduction <add>, %17, %cst_6 [1] : vector<256x128xf32> to vector<256xf32>
    %19 = vector.shape_cast %18 : vector<256xf32> to vector<256x1xf32>
    %c1 = arith.constant 1 : index
    %20 = memref.load %arg1[%c1] : memref<3xf32, #tpu.memory_space<smem>>
    %21 = vector.broadcast %20 : f32 to vector<256x1xf32>
    %22 = arith.addf %19, %21 : vector<256x1xf32>
    %c0_7 = arith.constant 0 : index
    %c0_8 = arith.constant 0 : index
    %23 = vector.load %arg5[%c0_7, %c0_8] : memref<256x128xf32, #tpu.memory_space<vmem>>, vector<256x128xf32>
    %24 = vector.extract_strided_slice %0 {offsets = [2, 0], sizes = [1, 128], strides = [1, 1]} : vector<3x128xf32> to vector<1x128xf32>
    %25 = vector.shape_cast %24 : vector<1x128xf32> to vector<128xf32>
    %26 = vector.shape_cast %25 : vector<128xf32> to vector<1x128xf32>
    %27 = vector.broadcast %26 : vector<1x128xf32> to vector<256x128xf32>
    %28 = arith.mulf %23, %27 : vector<256x128xf32>
    %cst_9 = arith.constant dense<0.000000e+00> : vector<256xf32>
    %29 = vector.multi_reduction <add>, %28, %cst_9 [1] : vector<256x128xf32> to vector<256xf32>
    %30 = vector.shape_cast %29 : vector<256xf32> to vector<256x1xf32>
    %c2 = arith.constant 2 : index
    %31 = memref.load %arg1[%c2] : memref<3xf32, #tpu.memory_space<smem>>
    %32 = vector.broadcast %31 : f32 to vector<256x1xf32>
    %33 = arith.addf %30, %32 : vector<256x1xf32>
    %34 = tpu.concatenate %11, %22, %33 in 1 : vector<256x1xf32>, vector<256x1xf32>, vector<256x1xf32> -> vector<256x3xf32>
    %35 = math.tanh %34 : vector<256x3xf32>
    %36 = math.exp %35 : vector<256x3xf32>
    %cst_10 = arith.constant dense<0.000000e+00> : vector<256xf32>
    %37 = vector.multi_reduction <add>, %36, %cst_10 [1] : vector<256x3xf32> to vector<256xf32>
    %38 = vector.shape_cast %37 : vector<256xf32> to vector<256x1xf32>
    %39 = vector.broadcast %38 : vector<256x1xf32> to vector<256x3xf32>
    %40 = arith.divf %36, %39 : vector<256x3xf32>
    %41 = vector.extract_strided_slice %40 {offsets = [0, 0], sizes = [256, 1], strides = [1, 1]} : vector<256x3xf32> to vector<256x1xf32>
    %c0_11 = arith.constant 0 : index
    %c0_12 = arith.constant 0 : index
    %42 = vector.load %arg3[%c0_11, %c0_12] : memref<256x128xf32, #tpu.memory_space<vmem>>, vector<256x128xf32>
    %43 = vector.broadcast %41 : vector<256x1xf32> to vector<256x128xf32>
    %44 = arith.mulf %43, %42 : vector<256x128xf32>
    %45 = vector.extract_strided_slice %40 {offsets = [0, 1], sizes = [256, 1], strides = [1, 1]} : vector<256x3xf32> to vector<256x1xf32>
    %c0_13 = arith.constant 0 : index
    %c0_14 = arith.constant 0 : index
    %46 = vector.load %arg4[%c0_13, %c0_14] : memref<256x128xf32, #tpu.memory_space<vmem>>, vector<256x128xf32>
    %47 = vector.broadcast %45 : vector<256x1xf32> to vector<256x128xf32>
    %48 = arith.mulf %47, %46 : vector<256x128xf32>
    %49 = arith.addf %44, %48 : vector<256x128xf32>
    %50 = vector.extract_strided_slice %40 {offsets = [0, 2], sizes = [256, 1], strides = [1, 1]} : vector<256x3xf32> to vector<256x1xf32>
    %c0_15 = arith.constant 0 : index
    %c0_16 = arith.constant 0 : index
    %51 = vector.load %arg5[%c0_15, %c0_16] : memref<256x128xf32, #tpu.memory_space<vmem>>, vector<256x128xf32>
    %52 = vector.broadcast %50 : vector<256x1xf32> to vector<256x128xf32>
    %53 = arith.mulf %52, %51 : vector<256x128xf32>
    %54 = arith.addf %49, %53 : vector<256x128xf32>
    %c0_17 = arith.constant 0 : index
    %c0_18 = arith.constant 0 : index
    %55 = vector.load %arg6[%c0_17, %c0_18] : memref<256x128xf32, #tpu.memory_space<vmem>>, vector<256x128xf32>
    tpu.vector_store %arg6[%c0_17, %c0_18], %54 {strides = array<i32>} : memref<256x128xf32, #tpu.memory_space<vmem>>, vector<256x128xf32>,
    return
  }
  func.func @transform_0(%arg0: i32) -> i32 {
    %c0_i32 = arith.constant 0 : i32
    %c0_i32_0 = arith.constant 0 : i32
    return %c0_i32 : i32
  }
  func.func @transform_1(%arg0: i32) -> (i32, i32) {
    %c0_i32 = arith.constant 0 : i32
    %c0_i32_0 = arith.constant 0 : i32
    %c0_i32_1 = arith.constant 0 : i32
    return %c0_i32, %c0_i32_0 : i32, i32
  }
  func.func @transform_2(%arg0: i32) -> (i32, i32) {
    %c0_i32 = arith.constant 0 : i32
    %c0_i32_0 = arith.constant 0 : i32
    return %arg0, %c0_i32 : i32, i32
  }
  func.func @transform_3(%arg0: i32) -> (i32, i32) {
    %c0_i32 = arith.constant 0 : i32
    %c0_i32_0 = arith.constant 0 : i32
    return %arg0, %c0_i32 : i32, i32
  }
  func.func @transform_4(%arg0: i32) -> (i32, i32) {
    %c0_i32 = arith.constant 0 : i32
    %c0_i32_0 = arith.constant 0 : i32
    return %arg0, %c0_i32 : i32, i32
  }
  func.func @transform_5(%arg0: i32) -> (i32, i32) {
    %c0_i32 = arith.constant 0 : i32
    %c0_i32_0 = arith.constant 0 : i32
    return %arg0, %c0_i32 : i32, i32
  }
}

</mosaic_0001>

<llo_original>
// kernel: tpu_custom_call.1
$region0: #{tpu_custom_call.1}
  #allocation0 [shape = 'u32[]', space=smem, size = 0x4, offset = 0x4, fixed_abs, tag = 'smem constant byte address 0x4 - core index']
  #allocation1 [shape = 'u32[72,128]{1,0:T(1,128)}', space=vmem, size = 0x9000, scoped, tag = 'internal scratch']
  %s0 = inlined_call_operand.hbm [shape: f32[3], index: 0, kind: input, shape index: {}]
  %s1 = inlined_call_operand.hbm [shape: f32[3,128], index: 1, kind: input, shape index: {}]
  %s2 = inlined_call_operand.hbm [shape: f32[250,128], index: 2, kind: input, shape index: {}]
  %s3 = inlined_call_operand.hbm [shape: f32[250,128], index: 3, kind: input, shape index: {}]
  %s4 = inlined_call_operand.hbm [shape: f32[250,128], index: 4, kind: input, shape index: {}]
  %s5 = inlined_call_operand.hbm [shape: f32[250,128], index: 5, kind: output, shape index: {}]
  %s6 = sld [smem:[#allocation0]]
  $region50: #{tpu_custom_call.1} parent=0
    _
  %s8 = ssub.s32 1, %s6
  %s9 = scalar_select 0, %s8, %s6
  $region1: #{tpu_custom_call.1} parent=0
    #allocation2 [shape = 'u8[512]{0}', space=smem, size = 0x200, scoped, tag = 'input window, operand 0, single buffered']
    #allocation3 [shape = 's32[1]{0}', space=sflag, size = 0x4, scoped, tag = 'scoped memory for tpu_custom_call.1']
    #allocation4 [shape = 's32[1]{0}', space=sflag, size = 0x4, scoped, tag = 'scoped memory for tpu_custom_call.1']
    #allocation5 [shape = 's32[1]{0}', space=sflag, size = 0x4, scoped, tag = 'scoped memory for tpu_custom_call.1']
    #allocation6 [shape = 'u8[2048]{0}', space=vmem, size = 0x800, scoped, tag = 'input window, operand 1, single buffered']
    #allocation7 [shape = 'u8[131072]{0}', space=vmem, size = 0x20000, scoped, tag = 'input window, operand 2, single buffered']
    #allocation8 [shape = 's32[1]{0}', space=sflag, size = 0x4, scoped, tag = 'scoped memory for tpu_custom_call.1']
    #allocation9 [shape = 'u8[131072]{0}', space=vmem, size = 0x20000, scoped, tag = 'input window, operand 3, single buffered']
    #allocation10 [shape = 'u8[131072]{0}', space=vmem, size = 0x20000, scoped, tag = 'input window, operand 4, single buffered']
    #allocation11 [shape = 's32[1]{0}', space=sflag, size = 0x4, scoped, tag = 'scoped memory for tpu_custom_call.1']
    #allocation12 [shape = 'u8[131072]{0}', space=vmem, size = 0x20000, scoped, tag = 'output window, operand 0, single buffered']
    %10 = vsyncpa [#allocation5], 0
    %11 = vsyncpa [#allocation3], 0
    %12 = vsyncpa [#allocation8], 0
    %13 = vsyncpa [#allocation11], 0
    %14 = vsyncpa [#allocation4], 0
    // Predicated region
    $region2: #{tpu_custom_call.1} parent=1 // pred_check
      _
    $region3: #{tpu_custom_call.1} parent=1 // pred_check_branch
      %16 = sbr.rel (0) target = $region5
    $region4: #{tpu_custom_call.1} parent=1 // pred_region
      %18 = vsyncadd [#allocation5], 0
      %s20 = sshll.u32 %s0, 4
      %s21 = int_to_ptr.hbm [resolvable:$true] %s20
      %23 = dma.hbm_to_smem %s21, 16, [#allocation2], [#allocation5]
    $region5: #{tpu_custom_call.1} parent=1 // pred_fallthru
      _
    // Predicated region
    $region6: #{tpu_custom_call.1} parent=1 // pred_check
      _
    $region7: #{tpu_custom_call.1} parent=1 // pred_check_branch
      %25 = sbr.rel (0) target = $region9
    $region8: #{tpu_custom_call.1} parent=1 // pred_region
      %27 = vsyncadd [#allocation3], 0
      %s29 = sshll.u32 %s1, 4
      %s30 = int_to_ptr.hbm [resolvable:$true] %s29
      %s31 = sshll.u32 [#allocation6], 4
      %s32 = int_to_ptr.vmem [resolvable:$true] %s31
      %34 = dma.hbm_to_vmem [thread:$0]  %s30, 64, %s32, [#allocation3]
    $region9: #{tpu_custom_call.1} parent=1 // pred_fallthru
      _
    // Predicated region
    $region10: #{tpu_custom_call.1} parent=1 // pred_check
      _
    $region11: #{tpu_custom_call.1} parent=1 // pred_check_branch
      %36 = sbr.rel (0) target = $region13
    $region12: #{tpu_custom_call.1} parent=1 // pred_region
      %38 = vsyncadd [#allocation8], 0
      %s39 = sshll.u32 %s2, 4
      %s40 = int_to_ptr.hbm [resolvable:$true] %s39
      %s41 = sshll.u32 [#allocation7], 4
      %s42 = int_to_ptr.vmem [resolvable:$true] %s41
      %47 = dma.hbm_to_vmem [thread:$0]  %s40, 4096, %s42, [#allocation8], 128, 128, 8
    $region13: #{tpu_custom_call.1} parent=1 // pred_fallthru
      _
    // Predicated region
    $region14: #{tpu_custom_call.1} parent=1 // pred_check
      _
    $region15: #{tpu_custom_call.1} parent=1 // pred_check_branch
      %49 = sbr.rel (0) target = $region17
    $region16: #{tpu_custom_call.1} parent=1 // pred_region
      %51 = vsyncadd [#allocation8], 0
      %s52 = sshll.u32 %s3, 4
      %s53 = int_to_ptr.hbm [resolvable:$true] %s52
      %s54 = sshll.u32 [#allocation9], 4
      %s55 = int_to_ptr.vmem [resolvable:$true] %s54
      %60 = dma.hbm_to_vmem [thread:$0]  %s53, 4096, %s55, [#allocation8], 128, 128, 8
    $region17: #{tpu_custom_call.1} parent=1 // pred_fallthru
      _
    // Predicated region
    $region18: #{tpu_custom_call.1} parent=1 // pred_check
      _
    $region19: #{tpu_custom_call.1} parent=1 // pred_check_branch
      %62 = sbr.rel (0) target = $region21
    $region20: #{tpu_custom_call.1} parent=1 // pred_region
      %64 = vsyncadd [#allocation11], 0
      %s65 = sshll.u32 %s4, 4
      %s66 = int_to_ptr.hbm [resolvable:$true] %s65
      %s67 = sshll.u32 [#allocation10], 4
      %s68 = int_to_ptr.vmem [resolvable:$true] %s67
      %73 = dma.hbm_to_vmem [thread:$0]  %s66, 4096, %s68, [#allocation11], 128, 128, 8
    $region21: #{tpu_custom_call.1} parent=1 // pred_fallthru
      _
    // Predicated region
    $region22: #{tpu_custom_call.1} parent=1 // pred_check
      _
    $region23: #{tpu_custom_call.1} parent=1 // pred_check_branch
      %75 = sbr.rel (0) target = $region25
    $region24: #{tpu_custom_call.1} parent=1 // pred_region
      %77 = dma.done [#allocation5], 16
    $region25: #{tpu_custom_call.1} parent=1 // pred_fallthru
      _
    // Predicated region
    $region26: #{tpu_custom_call.1} parent=1 // pred_check
      _
    $region27: #{tpu_custom_call.1} parent=1 // pred_check_branch
      %79 = sbr.rel (0) target = $region29
    $region28: #{tpu_custom_call.1} parent=1 // pred_region
      %81 = dma.done [#allocation3], 64
    $region29: #{tpu_custom_call.1} parent=1 // pred_fallthru
      _
    // Predicated region
    $region30: #{tpu_custom_call.1} parent=1 // pred_check
      _
    $region31: #{tpu_custom_call.1} parent=1 // pred_check_branch
      %83 = sbr.rel (0) target = $region33
    $region32: #{tpu_custom_call.1} parent=1 // pred_region
      %85 = dma.done [#allocation8], 4096
    $region33: #{tpu_custom_call.1} parent=1 // pred_fallthru
      _
    // Predicated region
    $region34: #{tpu_custom_call.1} parent=1 // pred_check
      _
    $region35: #{tpu_custom_call.1} parent=1 // pred_check_branch
      %87 = sbr.rel (0) target = $region37
    $region36: #{tpu_custom_call.1} parent=1 // pred_region
      %89 = dma.done [#allocation8], 4096
    $region37: #{tpu_custom_call.1} parent=1 // pred_fallthru
      _
    // Predicated region
    $region38: #{tpu_custom_call.1} parent=1 // pred_check
      _
    $region39: #{tpu_custom_call.1} parent=1 // pred_check_branch
      %91 = sbr.rel (0) target = $region41
    $region40: #{tpu_custom_call.1} parent=1 // pred_region
      %93 = dma.done [#allocation11], 4096
    $region41: #{tpu_custom_call.1} parent=1 // pred_fallthru
      _
    %94 = sfence
    %v95 = vld [vmem:[#allocation6] sm:$0x7]
    %v96 = vld [vmem:[#allocation7] sm:$0xff]
    %v97 = vld [vmem:[#allocation7 + $0x8] sm:$0xff]
    %v98 = vld [vmem:[#allocation7 + $0x10] sm:$0xff]
    %v99 = vld [vmem:[#allocation7 + $0x18] sm:$0xff]
    %v100 = vld [vmem:[#allocation7 + $0x20] sm:$0xff]
    %v101 = vld [vmem:[#allocation7 + $0x28] sm:$0xff]
    %v102 = vld [vmem:[#allocation7 + $0x30] sm:$0xff]
    %v103 = vld [vmem:[#allocation7 + $0x38] sm:$0xff]
    %v104 = vld [vmem:[#allocation7 + $0x40] sm:$0xff]
    %v105 = vld [vmem:[#allocation7 + $0x48] sm:$0xff]
    %v106 = vld [vmem:[#allocation7 + $0x50] sm:$0xff]
    %v107 = vld [vmem:[#allocation7 + $0x58] sm:$0xff]
    %v108 = vld [vmem:[#allocation7 + $0x60] sm:$0xff]
    %v109 = vld [vmem:[#allocation7 + $0x68] sm:$0xff]
    %v110 = vld [vmem:[#allocation7 + $0x70] sm:$0xff]
    %v111 = vld [vmem:[#allocation7 + $0x78] sm:$0xff]
    %v112 = vld [vmem:[#allocation7 + $0x80] sm:$0xff]
    %v113 = vld [vmem:[#allocation7 + $0x88] sm:$0xff]
    %v114 = vld [vmem:[#allocation7 + $0x90] sm:$0xff]
    %v115 = vld [vmem:[#allocation7 + $0x98] sm:$0xff]
    %v116 = vld [vmem:[#allocation7 + $0xa0] sm:$0xff]
    %v117 = vld [vmem:[#allocation7 + $0xa8] sm:$0xff]
    %v118 = vld [vmem:[#allocation7 + $0xb0] sm:$0xff]
    %v119 = vld [vmem:[#allocation7 + $0xb8] sm:$0xff]
    %v120 = vld [vmem:[#allocation7 + $0xc0] sm:$0xff]
    %v121 = vld [vmem:[#allocation7 + $0xc8] sm:$0xff]
    %v122 = vld [vmem:[#allocation7 + $0xd0] sm:$0xff]
    %v123 = vld [vmem:[#allocation7 + $0xd8] sm:$0xff]
    %v124 = vld [vmem:[#allocation7 + $0xe0] sm:$0xff]
    %v125 = vld [vmem:[#allocation7 + $0xe8] sm:$0xff]
    %v126 = vld [vmem:[#allocation7 + $0xf0] sm:$0xff]
    %v127 = vld [vmem:[#allocation7 + $0xf8] sm:$0xff]
    %v128 = vperm.slane %v95, 0
    %v129 = vmul.f32 %v96, %v128
    %v130 = vmul.f32 %v97, %v128
    %v131 = vmul.f32 %v98, %v128
    %v132 = vmul.f32 %v99, %v128
    %v133 = vmul.f32 %v100, %v128
    %v134 = vmul.f32 %v101, %v128
    %v135 = vmul.f32 %v102, %v128
    %v136 = vmul.f32 %v103, %v128
    %v137 = vmul.f32 %v104, %v128
    %v138 = vmul.f32 %v105, %v128
    %v139 = vmul.f32 %v106, %v128
    %v140 = vmul.f32 %v107, %v128
    %v141 = vmul.f32 %v108, %v128
    %v142 = vmul.f32 %v109, %v128
    %v143 = vmul.f32 %v110, %v128
    %v144 = vmul.f32 %v111, %v128
    %v145 = vmul.f32 %v112, %v128
    %v146 = vmul.f32 %v113, %v128
    %v147 = vmul.f32 %v114, %v128
    %v148 = vmul.f32 %v115, %v128
    %v149 = vmul.f32 %v116, %v128
    %v150 = vmul.f32 %v117, %v128
    %v151 = vmul.f32 %v118, %v128
    %v152 = vmul.f32 %v119, %v128
    %v153 = vmul.f32 %v120, %v128
    %v154 = vmul.f32 %v121, %v128
    %v155 = vmul.f32 %v122, %v128
    %v156 = vmul.f32 %v123, %v128
    %v157 = vmul.f32 %v124, %v128
    %v158 = vmul.f32 %v125, %v128
    %v159 = vmul.f32 %v126, %v128
    %v160 = vmul.f32 %v127, %v128
    %161 = vadd.xlane.f32.xlu0 %v129
    %v162 = vpop.xlane.xlu0 %161
    %163 = vadd.xlane.f32.xlu0 %v130
    %v164 = vpop.xlane.xlu0 %163
    %165 = vadd.xlane.f32.xlu0 %v131
    %v166 = vpop.xlane.xlu0 %165
    %167 = vadd.xlane.f32.xlu0 %v132
    %v168 = vpop.xlane.xlu0 %167
    %169 = vadd.xlane.f32.xlu0 %v133
    %v170 = vpop.xlane.xlu0 %169
    %171 = vadd.xlane.f32.xlu0 %v134
    %v172 = vpop.xlane.xlu0 %171
    %173 = vadd.xlane.f32.xlu0 %v135
    %v174 = vpop.xlane.xlu0 %173
    %175 = vadd.xlane.f32.xlu0 %v136
    %v176 = vpop.xlane.xlu0 %175
    %177 = vadd.xlane.f32.xlu0 %v137
    %v178 = vpop.xlane.xlu0 %177
    %179 = vadd.xlane.f32.xlu0 %v138
    %v180 = vpop.xlane.xlu0 %179
    %181 = vadd.xlane.f32.xlu0 %v139
    %v182 = vpop.xlane.xlu0 %181
    %183 = vadd.xlane.f32.xlu0 %v140
    %v184 = vpop.xlane.xlu0 %183
    %185 = vadd.xlane.f32.xlu0 %v141
    %v186 = vpop.xlane.xlu0 %185
    %187 = vadd.xlane.f32.xlu0 %v142
    %v188 = vpop.xlane.xlu0 %187
    %189 = vadd.xlane.f32.xlu0 %v143
    %v190 = vpop.xlane.xlu0 %189
    %191 = vadd.xlane.f32.xlu0 %v144
    %v192 = vpop.xlane.xlu0 %191
    %193 = vadd.xlane.f32.xlu0 %v145
    %v194 = vpop.xlane.xlu0 %193
    %195 = vadd.xlane.f32.xlu0 %v146
    %v196 = vpop.xlane.xlu0 %195
    %197 = vadd.xlane.f32.xlu0 %v147
    %v198 = vpop.xlane.xlu0 %197
    %199 = vadd.xlane.f32.xlu0 %v148
    %v200 = vpop.xlane.xlu0 %199
    %201 = vadd.xlane.f32.xlu0 %v149
    %v202 = vpop.xlane.xlu0 %201
    %203 = vadd.xlane.f32.xlu0 %v150
    %v204 = vpop.xlane.xlu0 %203
    %205 = vadd.xlane.f32.xlu0 %v151
    %v206 = vpop.xlane.xlu0 %205
    %207 = vadd.xlane.f32.xlu0 %v152
    %v208 = vpop.xlane.xlu0 %207
    %209 = vadd.xlane.f32.xlu0 %v153
    %v210 = vpop.xlane.xlu0 %209
    %211 = vadd.xlane.f32.xlu0 %v154
    %v212 = vpop.xlane.xlu0 %211
    %213 = vadd.xlane.f32.xlu0 %v155
    %v214 = vpop.xlane.xlu0 %213
    %215 = vadd.xlane.f32.xlu0 %v156
    %v216 = vpop.xlane.xlu0 %215
    %217 = vadd.xlane.f32.xlu0 %v157
    %v218 = vpop.xlane.xlu0 %217
    %219 = vadd.xlane.f32.xlu0 %v158
    %v220 = vpop.xlane.xlu0 %219
    %221 = vadd.xlane.f32.xlu0 %v159
    %v222 = vpop.xlane.xlu0 %221
    %223 = vadd.xlane.f32.xlu0 %v160
    %v224 = vpop.xlane.xlu0 %223
    %s225 = sld [smem:[#allocation2]]
    %v226 = vstv %s225
    %v227 = vadd.f32 %v162, %v226
    %v228 = vadd.f32 %v164, %v226
    %v229 = vadd.f32 %v166, %v226
    %v230 = vadd.f32 %v168, %v226
    %v231 = vadd.f32 %v170, %v226
    %v232 = vadd.f32 %v172, %v226
    %v233 = vadd.f32 %v174, %v226
    %v234 = vadd.f32 %v176, %v226
    %v235 = vadd.f32 %v178, %v226
    %v236 = vadd.f32 %v180, %v226
    %v237 = vadd.f32 %v182, %v226
    %v238 = vadd.f32 %v184, %v226
    %v239 = vadd.f32 %v186, %v226
    %v240 = vadd.f32 %v188, %v226
    %v241 = vadd.f32 %v190, %v226
    %v242 = vadd.f32 %v192, %v226
    %v243 = vadd.f32 %v194, %v226
    %v244 = vadd.f32 %v196, %v226
    %v245 = vadd.f32 %v198, %v226
    %v246 = vadd.f32 %v200, %v226
    %v247 = vadd.f32 %v202, %v226
    %v248 = vadd.f32 %v204, %v226
    %v249 = vadd.f32 %v206, %v226
    %v250 = vadd.f32 %v208, %v226
    %v251 = vadd.f32 %v210, %v226
    %v252 = vadd.f32 %v212, %v226
    %v253 = vadd.f32 %v214, %v226
    %v254 = vadd.f32 %v216, %v226
    %v255 = vadd.f32 %v218, %v226
    %v256 = vadd.f32 %v220, %v226
    %v257 = vadd.f32 %v222, %v226
    %v258 = vadd.f32 %v224, %v226
    %v259 = vld [vmem:[#allocation9] sm:$0xff]
    %v260 = vld [vmem:[#allocation9 + $0x8] sm:$0xff]
    %v261 = vld [vmem:[#allocation9 + $0x10] sm:$0xff]
    %v262 = vld [vmem:[#allocation9 + $0x18] sm:$0xff]
    %v263 = vld [vmem:[#allocation9 + $0x20] sm:$0xff]
    %v264 = vld [vmem:[#allocation9 + $0x28] sm:$0xff]
    %v265 = vld [vmem:[#allocation9 + $0x30] sm:$0xff]
    %v266 = vld [vmem:[#allocation9 + $0x38] sm:$0xff]
    %v267 = vld [vmem:[#allocation9 + $0x40] sm:$0xff]
    %v268 = vld [vmem:[#allocation9 + $0x48] sm:$0xff]
    %v269 = vld [vmem:[#allocation9 + $0x50] sm:$0xff]
    %v270 = vld [vmem:[#allocation9 + $0x58] sm:$0xff]
    %v271 = vld [vmem:[#allocation9 + $0x60] sm:$0xff]
    %v272 = vld [vmem:[#allocation9 + $0x68] sm:$0xff]
    %v273 = vld [vmem:[#allocation9 + $0x70] sm:$0xff]
    %v274 = vld [vmem:[#allocation9 + $0x78] sm:$0xff]
    %v275 = vld [vmem:[#allocation9 + $0x80] sm:$0xff]
    %v276 = vld [vmem:[#allocation9 + $0x88] sm:$0xff]
    %v277 = vld [vmem:[#allocation9 + $0x90] sm:$0xff]
    %v278 = vld [vmem:[#allocation9 + $0x98] sm:$0xff]
    %v279 = vld [vmem:[#allocation9 + $0xa0] sm:$0xff]
    %v280 = vld [vmem:[#allocation9 + $0xa8] sm:$0xff]
    %v281 = vld [vmem:[#allocation9 + $0xb0] sm:$0xff]
    %v282 = vld [vmem:[#allocation9 + $0xb8] sm:$0xff]
    %v283 = vld [vmem:[#allocation9 + $0xc0] sm:$0xff]
    %v284 = vld [vmem:[#allocation9 + $0xc8] sm:$0xff]
    %v285 = vld [vmem:[#allocation9 + $0xd0] sm:$0xff]
    %v286 = vld [vmem:[#allocation9 + $0xd8] sm:$0xff]
    %v287 = vld [vmem:[#allocation9 + $0xe0] sm:$0xff]
    %v288 = vld [vmem:[#allocation9 + $0xe8] sm:$0xff]
    %v289 = vld [vmem:[#allocation9 + $0xf0] sm:$0xff]
    %v290 = vld [vmem:[#allocation9 + $0xf8] sm:$0xff]
    %v291 = vperm.slane %v95, 1
    %v292 = vmul.f32 %v259, %v291
    %v293 = vmul.f32 %v260, %v291
    %v294 = vmul.f32 %v261, %v291
    %v295 = vmul.f32 %v262, %v291
    %v296 = vmul.f32 %v263, %v291
    %v297 = vmul.f32 %v264, %v291
    %v298 = vmul.f32 %v265, %v291
    %v299 = vmul.f32 %v266, %v291
    %v300 = vmul.f32 %v267, %v291
    %v301 = vmul.f32 %v268, %v291
    %v302 = vmul.f32 %v269, %v291
    %v303 = vmul.f32 %v270, %v291
    %v304 = vmul.f32 %v271, %v291
    %v305 = vmul.f32 %v272, %v291
    %v306 = vmul.f32 %v273, %v291
    %v307 = vmul.f32 %v274, %v291
    %v308 = vmul.f32 %v275, %v291
    %v309 = vmul.f32 %v276, %v291
    %v310 = vmul.f32 %v277, %v291
    %v311 = vmul.f32 %v278, %v291
    %v312 = vmul.f32 %v279, %v291
    %v313 = vmul.f32 %v280, %v291
    %v314 = vmul.f32 %v281, %v291
    %v315 = vmul.f32 %v282, %v291
    %v316 = vmul.f32 %v283, %v291
    %v317 = vmul.f32 %v284, %v291
    %v318 = vmul.f32 %v285, %v291
    %v319 = vmul.f32 %v286, %v291
    %v320 = vmul.f32 %v287, %v291
    %v321 = vmul.f32 %v288, %v291
    %v322 = vmul.f32 %v289, %v291
    %v323 = vmul.f32 %v290, %v291
    %324 = vadd.xlane.f32.xlu0 %v292
    %v325 = vpop.xlane.xlu0 %324
    %326 = vadd.xlane.f32.xlu0 %v293
    %v327 = vpop.xlane.xlu0 %326
    %328 = vadd.xlane.f32.xlu0 %v294
    %v329 = vpop.xlane.xlu0 %328
    %330 = vadd.xlane.f32.xlu0 %v295
    %v331 = vpop.xlane.xlu0 %330
    %332 = vadd.xlane.f32.xlu0 %v296
    %v333 = vpop.xlane.xlu0 %332
    %334 = vadd.xlane.f32.xlu0 %v297
    %v335 = vpop.xlane.xlu0 %334
    %336 = vadd.xlane.f32.xlu0 %v298
    %v337 = vpop.xlane.xlu0 %336
    %338 = vadd.xlane.f32.xlu0 %v299
    %v339 = vpop.xlane.xlu0 %338
    %340 = vadd.xlane.f32.xlu0 %v300
    %v341 = vpop.xlane.xlu0 %340
    %342 = vadd.xlane.f32.xlu0 %v301
    %v343 = vpop.xlane.xlu0 %342
    %344 = vadd.xlane.f32.xlu0 %v302
    %v345 = vpop.xlane.xlu0 %344
    %346 = vadd.xlane.f32.xlu0 %v303
    %v347 = vpop.xlane.xlu0 %346
    %348 = vadd.xlane.f32.xlu0 %v304
    %v349 = vpop.xlane.xlu0 %348
    %350 = vadd.xlane.f32.xlu0 %v305
    %v351 = vpop.xlane.xlu0 %350
    %352 = vadd.xlane.f32.xlu0 %v306
    %v353 = vpop.xlane.xlu0 %352
    %354 = vadd.xlane.f32.xlu0 %v307
    %v355 = vpop.xlane.xlu0 %354
    %356 = vadd.xlane.f32.xlu0 %v308
    %v357 = vpop.xlane.xlu0 %356
    %358 = vadd.xlane.f32.xlu0 %v309
    %v359 = vpop.xlane.xlu0 %358
    %360 = vadd.xlane.f32.xlu0 %v310
    %v361 = vpop.xlane.xlu0 %360
    %362 = vadd.xlane.f32.xlu0 %v311
    %v363 = vpop.xlane.xlu0 %362
    %364 = vadd.xlane.f32.xlu0 %v312
    %v365 = vpop.xlane.xlu0 %364
    %366 = vadd.xlane.f32.xlu0 %v313
    %v367 = vpop.xlane.xlu0 %366
    %368 = vadd.xlane.f32.xlu0 %v314
    %v369 = vpop.xlane.xlu0 %368
    %370 = vadd.xlane.f32.xlu0 %v315
    %v371 = vpop.xlane.xlu0 %370
    %372 = vadd.xlane.f32.xlu0 %v316
    %v373 = vpop.xlane.xlu0 %372
    %374 = vadd.xlane.f32.xlu0 %v317
    %v375 = vpop.xlane.xlu0 %374
    %376 = vadd.xlane.f32.xlu0 %v318
    %v377 = vpop.xlane.xlu0 %376
    %378 = vadd.xlane.f32.xlu0 %v319
    %v379 = vpop.xlane.xlu0 %378
    %380 = vadd.xlane.f32.xlu0 %v320
    %v381 = vpop.xlane.xlu0 %380
    %382 = vadd.xlane.f32.xlu0 %v321
    %v383 = vpop.xlane.xlu0 %382
    %384 = vadd.xlane.f32.xlu0 %v322
    %v385 = vpop.xlane.xlu0 %384
    %386 = vadd.xlane.f32.xlu0 %v323
    %v387 = vpop.xlane.xlu0 %386
    %s388 = sld [smem:[#allocation2 + $0x1]]
    %v389 = vstv %s388
    %v390 = vadd.f32 %v325, %v389
    %v391 = vadd.f32 %v327, %v389
    %v392 = vadd.f32 %v329, %v389
    %v393 = vadd.f32 %v331, %v389
    %v394 = vadd.f32 %v333, %v389
    %v395 = vadd.f32 %v335, %v389
    %v396 = vadd.f32 %v337, %v389
    %v397 = vadd.f32 %v339, %v389
    %v398 = vadd.f32 %v341, %v389
    %v399 = vadd.f32 %v343, %v389
    %v400 = vadd.f32 %v345, %v389
    %v401 = vadd.f32 %v347, %v389
    %v402 = vadd.f32 %v349, %v389
    %v403 = vadd.f32 %v351, %v389
    %v404 = vadd.f32 %v353, %v389
    %v405 = vadd.f32 %v355, %v389
    %v406 = vadd.f32 %v357, %v389
    %v407 = vadd.f32 %v359, %v389
    %v408 = vadd.f32 %v361, %v389
    %v409 = vadd.f32 %v363, %v389
    %v410 = vadd.f32 %v365, %v389
    %v411 = vadd.f32 %v367, %v389
    %v412 = vadd.f32 %v369, %v389
    %v413 = vadd.f32 %v371, %v389
    %v414 = vadd.f32 %v373, %v389
    %v415 = vadd.f32 %v375, %v389
    %v416 = vadd.f32 %v377, %v389
    %v417 = vadd.f32 %v379, %v389
    %v418 = vadd.f32 %v381, %v389
    %v419 = vadd.f32 %v383, %v389
    %v420 = vadd.f32 %v385, %v389
    %v421 = vadd.f32 %v387, %v389
    %v422 = vld [vmem:[#allocation10] sm:$0xff]
    %v423 = vld [vmem:[#allocation10 + $0x8] sm:$0xff]
    %v424 = vld [vmem:[#allocation10 + $0x10] sm:$0xff]
    %v425 = vld [vmem:[#allocation10 + $0x18] sm:$0xff]
    %v426 = vld [vmem:[#allocation10 + $0x20] sm:$0xff]
    %v427 = vld [vmem:[#allocation10 + $0x28] sm:$0xff]
    %v428 = vld [vmem:[#allocation10 + $0x30] sm:$0xff]
    %v429 = vld [vmem:[#allocation10 + $0x38] sm:$0xff]
    %v430 = vld [vmem:[#allocation10 + $0x40] sm:$0xff]
    %v431 = vld [vmem:[#allocation10 + $0x48] sm:$0xff]
    %v432 = vld [vmem:[#allocation10 + $0x50] sm:$0xff]
    %v433 = vld [vmem:[#allocation10 + $0x58] sm:$0xff]
    %v434 = vld [vmem:[#allocation10 + $0x60] sm:$0xff]
    %v435 = vld [vmem:[#allocation10 + $0x68] sm:$0xff]
    %v436 = vld [vmem:[#allocation10 + $0x70] sm:$0xff]
    %v437 = vld [vmem:[#allocation10 + $0x78] sm:$0xff]
    %v438 = vld [vmem:[#allocation10 + $0x80] sm:$0xff]
    %v439 = vld [vmem:[#allocation10 + $0x88] sm:$0xff]
    %v440 = vld [vmem:[#allocation10 + $0x90] sm:$0xff]
    %v441 = vld [vmem:[#allocation10 + $0x98] sm:$0xff]
    %v442 = vld [vmem:[#allocation10 + $0xa0] sm:$0xff]
    %v443 = vld [vmem:[#allocation10 + $0xa8] sm:$0xff]
    %v444 = vld [vmem:[#allocation10 + $0xb0] sm:$0xff]
    %v445 = vld [vmem:[#allocation10 + $0xb8] sm:$0xff]
    %v446 = vld [vmem:[#allocation10 + $0xc0] sm:$0xff]
    %v447 = vld [vmem:[#allocation10 + $0xc8] sm:$0xff]
    %v448 = vld [vmem:[#allocation10 + $0xd0] sm:$0xff]
    %v449 = vld [vmem:[#allocation10 + $0xd8] sm:$0xff]
    %v450 = vld [vmem:[#allocation10 + $0xe0] sm:$0xff]
    %v451 = vld [vmem:[#allocation10 + $0xe8] sm:$0xff]
    %v452 = vld [vmem:[#allocation10 + $0xf0] sm:$0xff]
    %v453 = vld [vmem:[#allocation10 + $0xf8] sm:$0xff]
    %v454 = vperm.slane %v95, 2
    %v455 = vmul.f32 %v422, %v454
    %v456 = vmul.f32 %v423, %v454
    %v457 = vmul.f32 %v424, %v454
    %v458 = vmul.f32 %v425, %v454
    %v459 = vmul.f32 %v426, %v454
    %v460 = vmul.f32 %v427, %v454
    %v461 = vmul.f32 %v428, %v454
    %v462 = vmul.f32 %v429, %v454
    %v463 = vmul.f32 %v430, %v454
    %v464 = vmul.f32 %v431, %v454
    %v465 = vmul.f32 %v432, %v454
    %v466 = vmul.f32 %v433, %v454
    %v467 = vmul.f32 %v434, %v454
    %v468 = vmul.f32 %v435, %v454
    %v469 = vmul.f32 %v436, %v454
    %v470 = vmul.f32 %v437, %v454
    %v471 = vmul.f32 %v438, %v454
    %v472 = vmul.f32 %v439, %v454
    %v473 = vmul.f32 %v440, %v454
    %v474 = vmul.f32 %v441, %v454
    %v475 = vmul.f32 %v442, %v454
    %v476 = vmul.f32 %v443, %v454
    %v477 = vmul.f32 %v444, %v454
    %v478 = vmul.f32 %v445, %v454
    %v479 = vmul.f32 %v446, %v454
    %v480 = vmul.f32 %v447, %v454
    %v481 = vmul.f32 %v448, %v454
    %v482 = vmul.f32 %v449, %v454
    %v483 = vmul.f32 %v450, %v454
    %v484 = vmul.f32 %v451, %v454
    %v485 = vmul.f32 %v452, %v454
    %v486 = vmul.f32 %v453, %v454
    %487 = vadd.xlane.f32.xlu0 %v455
    %v488 = vpop.xlane.xlu0 %487
    %489 = vadd.xlane.f32.xlu0 %v456
    %v490 = vpop.xlane.xlu0 %489
    %491 = vadd.xlane.f32.xlu0 %v457
    %v492 = vpop.xlane.xlu0 %491
    %493 = vadd.xlane.f32.xlu0 %v458
    %v494 = vpop.xlane.xlu0 %493
    %495 = vadd.xlane.f32.xlu0 %v459
    %v496 = vpop.xlane.xlu0 %495
    %497 = vadd.xlane.f32.xlu0 %v460
    %v498 = vpop.xlane.xlu0 %497
    %499 = vadd.xlane.f32.xlu0 %v461
    %v500 = vpop.xlane.xlu0 %499
    %501 = vadd.xlane.f32.xlu0 %v462
    %v502 = vpop.xlane.xlu0 %501
    %503 = vadd.xlane.f32.xlu0 %v463
    %v504 = vpop.xlane.xlu0 %503
    %505 = vadd.xlane.f32.xlu0 %v464
    %v506 = vpop.xlane.xlu0 %505
    %507 = vadd.xlane.f32.xlu0 %v465
    %v508 = vpop.xlane.xlu0 %507
    %509 = vadd.xlane.f32.xlu0 %v466
    %v510 = vpop.xlane.xlu0 %509
    %511 = vadd.xlane.f32.xlu0 %v467
    %v512 = vpop.xlane.xlu0 %511
    %513 = vadd.xlane.f32.xlu0 %v468
    %v514 = vpop.xlane.xlu0 %513
    %515 = vadd.xlane.f32.xlu0 %v469
    %v516 = vpop.xlane.xlu0 %515
    %517 = vadd.xlane.f32.xlu0 %v470
    %v518 = vpop.xlane.xlu0 %517
    %519 = vadd.xlane.f32.xlu0 %v471
    %v520 = vpop.xlane.xlu0 %519
    %521 = vadd.xlane.f32.xlu0 %v472
    %v522 = vpop.xlane.xlu0 %521
    %523 = vadd.xlane.f32.xlu0 %v473
    %v524 = vpop.xlane.xlu0 %523
    %525 = vadd.xlane.f32.xlu0 %v474
    %v526 = vpop.xlane.xlu0 %525
    %527 = vadd.xlane.f32.xlu0 %v475
    %v528 = vpop.xlane.xlu0 %527
    %529 = vadd.xlane.f32.xlu0 %v476
    %v530 = vpop.xlane.xlu0 %529
    %531 = vadd.xlane.f32.xlu0 %v477
    %v532 = vpop.xlane.xlu0 %531
    %533 = vadd.xlane.f32.xlu0 %v478
    %v534 = vpop.xlane.xlu0 %533
    %535 = vadd.xlane.f32.xlu0 %v479
    %v536 = vpop.xlane.xlu0 %535
    %537 = vadd.xlane.f32.xlu0 %v480
    %v538 = vpop.xlane.xlu0 %537
    %539 = vadd.xlane.f32.xlu0 %v481
    %v540 = vpop.xlane.xlu0 %539
    %541 = vadd.xlane.f32.xlu0 %v482
    %v542 = vpop.xlane.xlu0 %541
    %543 = vadd.xlane.f32.xlu0 %v483
    %v544 = vpop.xlane.xlu0 %543
    %545 = vadd.xlane.f32.xlu0 %v484
    %v546 = vpop.xlane.xlu0 %545
    %547 = vadd.xlane.f32.xlu0 %v485
    %v548 = vpop.xlane.xlu0 %547
    %549 = vadd.xlane.f32.xlu0 %v486
    %v550 = vpop.xlane.xlu0 %549
    %s551 = sld [smem:[#allocation2 + $0x2]]
    %v552 = vstv %s551
    %v553 = vadd.f32 %v488, %v552
    %v554 = vadd.f32 %v490, %v552
    %v555 = vadd.f32 %v492, %v552
    %v556 = vadd.f32 %v494, %v552
    %v557 = vadd.f32 %v496, %v552
    %v558 = vadd.f32 %v498, %v552
    %v559 = vadd.f32 %v500, %v552
    %v560 = vadd.f32 %v502, %v552
    %v561 = vadd.f32 %v504, %v552
    %v562 = vadd.f32 %v506, %v552
    %v563 = vadd.f32 %v508, %v552
    %v564 = vadd.f32 %v510, %v552
    %v565 = vadd.f32 %v512, %v552
    %v566 = vadd.f32 %v514, %v552
    %v567 = vadd.f32 %v516, %v552
    %v568 = vadd.f32 %v518, %v552
    %v569 = vadd.f32 %v520, %v552
    %v570 = vadd.f32 %v522, %v552
    %v571 = vadd.f32 %v524, %v552
    %v572 = vadd.f32 %v526, %v552
    %v573 = vadd.f32 %v528, %v552
    %v574 = vadd.f32 %v530, %v552
    %v575 = vadd.f32 %v532, %v552
    %v576 = vadd.f32 %v534, %v552
    %v577 = vadd.f32 %v536, %v552
    %v578 = vadd.f32 %v538, %v552
    %v579 = vadd.f32 %v540, %v552
    %v580 = vadd.f32 %v542, %v552
    %v581 = vadd.f32 %v544, %v552
    %v582 = vadd.f32 %v546, %v552
    %v583 = vadd.f32 %v548, %v552
    %v584 = vadd.f32 %v550, %v552
    %vm585 = vcmask 7168
    %v586 = vsel %vm585, %v227, %v390
    %v587 = vsel %vm585, %v228, %v391
    %v588 = vsel %vm585, %v229, %v392
    %v589 = vsel %vm585, %v230, %v393
    %v590 = vsel %vm585, %v231, %v394
    %v591 = vsel %vm585, %v232, %v395
    %v592 = vsel %vm585, %v233, %v396
    %v593 = vsel %vm585, %v234, %v397
    %v594 = vsel %vm585, %v235, %v398
    %v595 = vsel %vm585, %v236, %v399
    %v596 = vsel %vm585, %v237, %v400
    %v597 = vsel %vm585, %v238, %v401
    %v598 = vsel %vm585, %v239, %v402
    %v599 = vsel %vm585, %v240, %v403
    %v600 = vsel %vm585, %v241, %v404
    %v601 = vsel %vm585, %v242, %v405
    %v602 = vsel %vm585, %v243, %v406
    %v603 = vsel %vm585, %v244, %v407
    %v604 = vsel %vm585, %v245, %v408
    %v605 = vsel %vm585, %v246, %v409
    %v606 = vsel %vm585, %v247, %v410
    %v607 = vsel %vm585, %v248, %v411
    %v608 = vsel %vm585, %v249, %v412
    %v609 = vsel %vm585, %v250, %v413
    %v610 = vsel %vm585, %v251, %v414
    %v611 = vsel %vm585, %v252, %v415
    %v612 = vsel %vm585, %v253, %v416
    %v613 = vsel %vm585, %v254, %v417
    %v614 = vsel %vm585, %v255, %v418
    %v615 = vsel %vm585, %v256, %v419
    %v616 = vsel %vm585, %v257, %v420
    %v617 = vsel %vm585, %v258, %v421
    %vm618 = vcmask 15360
    %v619 = vsel %vm618, %v586, %v553
    %v620 = vsel %vm618, %v587, %v554
    %v621 = vsel %vm618, %v588, %v555
    %v622 = vsel %vm618, %v589, %v556
    %v623 = vsel %vm618, %v590, %v557
    %v624 = vsel %vm618, %v591, %v558
    %v625 = vsel %vm618, %v592, %v559
    %v626 = vsel %vm618, %v593, %v560
    %v627 = vsel %vm618, %v594, %v561
    %v628 = vsel %vm618, %v595, %v562
    %v629 = vsel %vm618, %v596, %v563
    %v630 = vsel %vm618, %v597, %v564
    %v631 = vsel %vm618, %v598, %v565
    %v632 = vsel %vm618, %v599, %v566
    %v633 = vsel %vm618, %v600, %v567
    %v634 = vsel %vm618, %v601, %v568
    %v635 = vsel %vm618, %v602, %v569
    %v636 = vsel %vm618, %v603, %v570
    %v637 = vsel %vm618, %v604, %v571
    %v638 = vsel %vm618, %v605, %v572
    %v639 = vsel %vm618, %v606, %v573
    %v640 = vsel %vm618, %v607, %v574
    %v641 = vsel %vm618, %v608, %v575
    %v642 = vsel %vm618, %v609, %v576
    %v643 = vsel %vm618, %v610, %v577
    %v644 = vsel %vm618, %v611, %v578
    %v645 = vsel %vm618, %v612, %v579
    %v646 = vsel %vm618, %v613, %v580
    %v647 = vsel %vm618, %v614, %v581
    %v648 = vsel %vm618, %v615, %v582
    %v649 = vsel %vm618, %v616, %v583
    %v650 = vsel %vm618, %v617, %v584
    %v651 = vtanh.pop %v619
    %v652 = vtanh.pop %v620
    %v653 = vtanh.pop %v621
    %v654 = vtanh.pop %v622
    %v655 = vtanh.pop %v623
    %v656 = vtanh.pop %v624
    %v657 = vtanh.pop %v625
    %v658 = vtanh.pop %v626
    %v659 = vtanh.pop %v627
    %v660 = vtanh.pop %v628
    %v661 = vtanh.pop %v629
    %v662 = vtanh.pop %v630
    %v663 = vtanh.pop %v631
    %v664 = vtanh.pop %v632
    %v665 = vtanh.pop %v633
    %v666 = vtanh.pop %v634
    %v667 = vtanh.pop %v635
    %v668 = vtanh.pop %v636
    %v669 = vtanh.pop %v637
    %v670 = vtanh.pop %v638
    %v671 = vtanh.pop %v639
    %v672 = vtanh.pop %v640
    %v673 = vtanh.pop %v641
    %v674 = vtanh.pop %v642
    %v675 = vtanh.pop %v643
    %v676 = vtanh.pop %v644
    %v677 = vtanh.pop %v645
    %v678 = vtanh.pop %v646
    %v679 = vtanh.pop %v647
    %v680 = vtanh.pop %v648
    %v681 = vtanh.pop %v649
    %v682 = vtanh.pop %v650
    %v683 = vmul.f32 %v651, 1.442695
    %v684 = vpow.pop %v683
    %v685 = vmul.f32 %v652, 1.442695
    %v686 = vpow.pop %v685
    %v687 = vmul.f32 %v653, 1.442695
    %v688 = vpow.pop %v687
    %v689 = vmul.f32 %v654, 1.442695
    %v690 = vpow.pop %v689
    %v691 = vmul.f32 %v655, 1.442695
    %v692 = vpow.pop %v691
    %v693 = vmul.f32 %v656, 1.442695
    %v694 = vpow.pop %v693
    %v695 = vmul.f32 %v657, 1.442695
    %v696 = vpow.pop %v695
    %v697 = vmul.f32 %v658, 1.442695
    %v698 = vpow.pop %v697
    %v699 = vmul.f32 %v659, 1.442695
    %v700 = vpow.pop %v699
    %v701 = vmul.f32 %v660, 1.442695
    %v702 = vpow.pop %v701
    %v703 = vmul.f32 %v661, 1.442695
    %v704 = vpow.pop %v703
    %v705 = vmul.f32 %v662, 1.442695
    %v706 = vpow.pop %v705
    %v707 = vmul.f32 %v663, 1.442695
    %v708 = vpow.pop %v707
    %v709 = vmul.f32 %v664, 1.442695
    %v710 = vpow.pop %v709
    %v711 = vmul.f32 %v665, 1.442695
    %v712 = vpow.pop %v711
    %v713 = vmul.f32 %v666, 1.442695
    %v714 = vpow.pop %v713
    %v715 = vmul.f32 %v667, 1.442695
    %v716 = vpow.pop %v715
    %v717 = vmul.f32 %v668, 1.442695
    %v718 = vpow.pop %v717
    %v719 = vmul.f32 %v669, 1.442695
    %v720 = vpow.pop %v719
    %v721 = vmul.f32 %v670, 1.442695
    %v722 = vpow.pop %v721
    %v723 = vmul.f32 %v671, 1.442695
    %v724 = vpow.pop %v723
    %v725 = vmul.f32 %v672, 1.442695
    %v726 = vpow.pop %v725
    %v727 = vmul.f32 %v673, 1.442695
    %v728 = vpow.pop %v727
    %v729 = vmul.f32 %v674, 1.442695
    %v730 = vpow.pop %v729
    %v731 = vmul.f32 %v675, 1.442695
    %v732 = vpow.pop %v731
    %v733 = vmul.f32 %v676, 1.442695
    %v734 = vpow.pop %v733
    %v735 = vmul.f32 %v677, 1.442695
    %v736 = vpow.pop %v735
    %v737 = vmul.f32 %v678, 1.442695
    %v738 = vpow.pop %v737
    %v739 = vmul.f32 %v679, 1.442695
    %v740 = vpow.pop %v739
    %v741 = vmul.f32 %v680, 1.442695
    %v742 = vpow.pop %v741
    %v743 = vmul.f32 %v681, 1.442695
    %v744 = vpow.pop %v743
    %v745 = vmul.f32 %v682, 1.442695
    %v746 = vpow.pop %v745
    %vm747 = vcmask 23552
    %v748 = vsel %vm747, %v684, 0.0
    %749 = vadd.xlane.f32.xlu0 %v748
    %v750 = vpop.xlane.xlu0 %749
    %v751 = vsel %vm747, %v686, 0.0
    %752 = vadd.xlane.f32.xlu0 %v751
    %v753 = vpop.xlane.xlu0 %752
    %v754 = vsel %vm747, %v688, 0.0
    %755 = vadd.xlane.f32.xlu0 %v754
    %v756 = vpop.xlane.xlu0 %755
    %v757 = vsel %vm747, %v690, 0.0
    %758 = vadd.xlane.f32.xlu0 %v757
    %v759 = vpop.xlane.xlu0 %758
    %v760 = vsel %vm747, %v692, 0.0
    %761 = vadd.xlane.f32.xlu0 %v760
    %v762 = vpop.xlane.xlu0 %761
    %v763 = vsel %vm747, %v694, 0.0
    %764 = vadd.xlane.f32.xlu0 %v763
    %v765 = vpop.xlane.xlu0 %764
    %v766 = vsel %vm747, %v696, 0.0
    %767 = vadd.xlane.f32.xlu0 %v766
    %v768 = vpop.xlane.xlu0 %767
    %v769 = vsel %vm747, %v698, 0.0
    %770 = vadd.xlane.f32.xlu0 %v769
    %v771 = vpop.xlane.xlu0 %770
    %v772 = vsel %vm747, %v700, 0.0
    %773 = vadd.xlane.f32.xlu0 %v772
    %v774 = vpop.xlane.xlu0 %773
    %v775 = vsel %vm747, %v702, 0.0
    %776 = vadd.xlane.f32.xlu0 %v775
    %v777 = vpop.xlane.xlu0 %776
    %v778 = vsel %vm747, %v704, 0.0
    %779 = vadd.xlane.f32.xlu0 %v778
    %v780 = vpop.xlane.xlu0 %779
    %v781 = vsel %vm747, %v706, 0.0
    %782 = vadd.xlane.f32.xlu0 %v781
    %v783 = vpop.xlane.xlu0 %782
    %v784 = vsel %vm747, %v708, 0.0
    %785 = vadd.xlane.f32.xlu0 %v784
    %v786 = vpop.xlane.xlu0 %785
    %v787 = vsel %vm747, %v710, 0.0
    %788 = vadd.xlane.f32.xlu0 %v787
    %v789 = vpop.xlane.xlu0 %788
    %v790 = vsel %vm747, %v712, 0.0
    %791 = vadd.xlane.f32.xlu0 %v790
    %v792 = vpop.xlane.xlu0 %791
    %v793 = vsel %vm747, %v714, 0.0
    %794 = vadd.xlane.f32.xlu0 %v793
    %v795 = vpop.xlane.xlu0 %794
    %v796 = vsel %vm747, %v716, 0.0
    %797 = vadd.xlane.f32.xlu0 %v796
    %v798 = vpop.xlane.xlu0 %797
    %v799 = vsel %vm747, %v718, 0.0
    %800 = vadd.xlane.f32.xlu0 %v799
    %v801 = vpop.xlane.xlu0 %800
    %v802 = vsel %vm747, %v720, 0.0
    %803 = vadd.xlane.f32.xlu0 %v802
    %v804 = vpop.xlane.xlu0 %803
    %v805 = vsel %vm747, %v722, 0.0
    %806 = vadd.xlane.f32.xlu0 %v805
    %v807 = vpop.xlane.xlu0 %806
    %v808 = vsel %vm747, %v724, 0.0
    %809 = vadd.xlane.f32.xlu0 %v808
    %v810 = vpop.xlane.xlu0 %809
    %v811 = vsel %vm747, %v726, 0.0
    %812 = vadd.xlane.f32.xlu0 %v811
    %v813 = vpop.xlane.xlu0 %812
    %v814 = vsel %vm747, %v728, 0.0
    %815 = vadd.xlane.f32.xlu0 %v814
    %v816 = vpop.xlane.xlu0 %815
    %v817 = vsel %vm747, %v730, 0.0
    %818 = vadd.xlane.f32.xlu0 %v817
    %v819 = vpop.xlane.xlu0 %818
    %v820 = vsel %vm747, %v732, 0.0
    %821 = vadd.xlane.f32.xlu0 %v820
    %v822 = vpop.xlane.xlu0 %821
    %v823 = vsel %vm747, %v734, 0.0
    %824 = vadd.xlane.f32.xlu0 %v823
    %v825 = vpop.xlane.xlu0 %824
    %v826 = vsel %vm747, %v736, 0.0
    %827 = vadd.xlane.f32.xlu0 %v826
    %v828 = vpop.xlane.xlu0 %827
    %v829 = vsel %vm747, %v738, 0.0
    %830 = vadd.xlane.f32.xlu0 %v829
    %v831 = vpop.xlane.xlu0 %830
    %v832 = vsel %vm747, %v740, 0.0
    %833 = vadd.xlane.f32.xlu0 %v832
    %v834 = vpop.xlane.xlu0 %833
    %v835 = vsel %vm747, %v742, 0.0
    %836 = vadd.xlane.f32.xlu0 %v835
    %v837 = vpop.xlane.xlu0 %836
    %v838 = vsel %vm747, %v744, 0.0
    %839 = vadd.xlane.f32.xlu0 %v838
    %v840 = vpop.xlane.xlu0 %839
    %v841 = vsel %vm747, %v746, 0.0
    %842 = vadd.xlane.f32.xlu0 %v841
    %v843 = vpop.xlane.xlu0 %842
    %v844 = vrcp.pop %v750
    %v845 = vmul.f32 %v750, %v844
    %v846 = vsub.f32 1.0, %v845
    %v847 = vmul.f32 %v844, %v846
    %v848 = vadd.f32 %v844, %v847
    %vm849 = vweird.f32 %v750
    %vm850 = vweird.f32 %v844
    %vm851 = vmor %vm849, %vm850
    %v852 = vsel %vm851, %v844, %v848
    %v853 = vand.u32 2147483647, %v750
    %vm854 = vcmp.eq.f32.partialorder %v853, 8.507059e+37
    %v855 = vand.u32 %v750, 2147483648
    %v856 = vor.u32 1.1754944e-38, %v855
    %v857 = vsel %vm854, %v856, %v852
    %v858 = vmul.f32 %v684, %v857
    %v859 = vrcp.pop %v753
    %v860 = vmul.f32 %v753, %v859
    %v861 = vsub.f32 1.0, %v860
    %v862 = vmul.f32 %v859, %v861
    %v863 = vadd.f32 %v859, %v862
    %vm864 = vweird.f32 %v753
    %vm865 = vweird.f32 %v859
    %vm866 = vmor %vm864, %vm865
    %v867 = vsel %vm866, %v859, %v863
    %v868 = vand.u32 2147483647, %v753
    %vm869 = vcmp.eq.f32.partialorder %v868, 8.507059e+37
    %v870 = vand.u32 %v753, 2147483648
    %v871 = vor.u32 1.1754944e-38, %v870
    %v872 = vsel %vm869, %v871, %v867
    %v873 = vmul.f32 %v686, %v872
    %v874 = vrcp.pop %v756
    %v875 = vmul.f32 %v756, %v874
    %v876 = vsub.f32 1.0, %v875
    %v877 = vmul.f32 %v874, %v876
    %v878 = vadd.f32 %v874, %v877
    %vm879 = vweird.f32 %v756
    %vm880 = vweird.f32 %v874
    %vm881 = vmor %vm879, %vm880
    %v882 = vsel %vm881, %v874, %v878
    %v883 = vand.u32 2147483647, %v756
    %vm884 = vcmp.eq.f32.partialorder %v883, 8.507059e+37
    %v885 = vand.u32 %v756, 2147483648
    %v886 = vor.u32 1.1754944e-38, %v885
    %v887 = vsel %vm884, %v886, %v882
    %v888 = vmul.f32 %v688, %v887
    %v889 = vrcp.pop %v759
    %v890 = vmul.f32 %v759, %v889
    %v891 = vsub.f32 1.0, %v890
    %v892 = vmul.f32 %v889, %v891
    %v893 = vadd.f32 %v889, %v892
    %vm894 = vweird.f32 %v759
    %vm895 = vweird.f32 %v889
    %vm896 = vmor %vm894, %vm895
    %v897 = vsel %vm896, %v889, %v893
    %v898 = vand.u32 2147483647, %v759
    %vm899 = vcmp.eq.f32.partialorder %v898, 8.507059e+37
    %v900 = vand.u32 %v759, 2147483648
    %v901 = vor.u32 1.1754944e-38, %v900
    %v902 = vsel %vm899, %v901, %v897
    %v903 = vmul.f32 %v690, %v902
    %v904 = vrcp.pop %v762
    %v905 = vmul.f32 %v762, %v904
    %v906 = vsub.f32 1.0, %v905
    %v907 = vmul.f32 %v904, %v906
    %v908 = vadd.f32 %v904, %v907
    %vm909 = vweird.f32 %v762
    %vm910 = vweird.f32 %v904
    %vm911 = vmor %vm909, %vm910
    %v912 = vsel %vm911, %v904, %v908
    %v913 = vand.u32 2147483647, %v762
    %vm914 = vcmp.eq.f32.partialorder %v913, 8.507059e+37
    %v915 = vand.u32 %v762, 2147483648
    %v916 = vor.u32 1.1754944e-38, %v915
    %v917 = vsel %vm914, %v916, %v912
    %v918 = vmul.f32 %v692, %v917
    %v919 = vrcp.pop %v765
    %v920 = vmul.f32 %v765, %v919
    %v921 = vsub.f32 1.0, %v920
    %v922 = vmul.f32 %v919, %v921
    %v923 = vadd.f32 %v919, %v922
    %vm924 = vweird.f32 %v765
    %vm925 = vweird.f32 %v919
    %vm926 = vmor %vm924, %vm925
    %v927 = vsel %vm926, %v919, %v923
    %v928 = vand.u32 2147483647, %v765
    %vm929 = vcmp.eq.f32.partialorder %v928, 8.507059e+37
    %v930 = vand.u32 %v765, 2147483648
    %v931 = vor.u32 1.1754944e-38, %v930
    %v932 = vsel %vm929, %v931, %v927
    %v933 = vmul.f32 %v694, %v932
    %v934 = vrcp.pop %v768
    %v935 = vmul.f32 %v768, %v934
    %v936 = vsub.f32 1.0, %v935
    %v937 = vmul.f32 %v934, %v936
    %v938 = vadd.f32 %v934, %v937
    %vm939 = vweird.f32 %v768
    %vm940 = vweird.f32 %v934
    %vm941 = vmor %vm939, %vm940
    %v942 = vsel %vm941, %v934, %v938
    %v943 = vand.u32 2147483647, %v768
    %vm944 = vcmp.eq.f32.partialorder %v943, 8.507059e+37
    %v945 = vand.u32 %v768, 2147483648
    %v946 = vor.u32 1.1754944e-38, %v945
    %v947 = vsel %vm944, %v946, %v942
    %v948 = vmul.f32 %v696, %v947
    %v949 = vrcp.pop %v771
    %v950 = vmul.f32 %v771, %v949
    %v951 = vsub.f32 1.0, %v950
    %v952 = vmul.f32 %v949, %v951
    %v953 = vadd.f32 %v949, %v952
    %vm954 = vweird.f32 %v771
    %vm955 = vweird.f32 %v949
    %vm956 = vmor %vm954, %vm955
    %v957 = vsel %vm956, %v949, %v953
    %v958 = vand.u32 2147483647, %v771
    %vm959 = vcmp.eq.f32.partialorder %v958, 8.507059e+37
    %v960 = vand.u32 %v771, 2147483648
    %v961 = vor.u32 1.1754944e-38, %v960
    %v962 = vsel %vm959, %v961, %v957
    %v963 = vmul.f32 %v698, %v962
    %v964 = vrcp.pop %v774
    %v965 = vmul.f32 %v774, %v964
    %v966 = vsub.f32 1.0, %v965
    %v967 = vmul.f32 %v964, %v966
    %v968 = vadd.f32 %v964, %v967
    %vm969 = vweird.f32 %v774
    %vm970 = vweird.f32 %v964
    %vm971 = vmor %vm969, %vm970
    %v972 = vsel %vm971, %v964, %v968
    %v973 = vand.u32 2147483647, %v774
    %vm974 = vcmp.eq.f32.partialorder %v973, 8.507059e+37
    %v975 = vand.u32 %v774, 2147483648
    %v976 = vor.u32 1.1754944e-38, %v975
    %v977 = vsel %vm974, %v976, %v972
    %v978 = vmul.f32 %v700, %v977
    %v979 = vrcp.pop %v777
    %v980 = vmul.f32 %v777, %v979
    %v981 = vsub.f32 1.0, %v980
    %v982 = vmul.f32 %v979, %v981
    %v983 = vadd.f32 %v979, %v982
    %vm984 = vweird.f32 %v777
    %vm985 = vweird.f32 %v979
    %vm986 = vmor %vm984, %vm985
    %v987 = vsel %vm986, %v979, %v983
    %v988 = vand.u32 2147483647, %v777
    %vm989 = vcmp.eq.f32.partialorder %v988, 8.507059e+37
    %v990 = vand.u32 %v777, 2147483648
    %v991 = vor.u32 1.1754944e-38, %v990
    %v992 = vsel %vm989, %v991, %v987
    %v993 = vmul.f32 %v702, %v992
    %v994 = vrcp.pop %v780
    %v995 = vmul.f32 %v780, %v994
    %v996 = vsub.f32 1.0, %v995
    %v997 = vmul.f32 %v994, %v996
    %v998 = vadd.f32 %v994, %v997
    %vm999 = vweird.f32 %v780
    %vm1000 = vweird.f32 %v994
    %vm1001 = vmor %vm999, %vm1000
    %v1002 = vsel %vm1001, %v994, %v998
    %v1003 = vand.u32 2147483647, %v780
    %vm1004 = vcmp.eq.f32.partialorder %v1003, 8.507059e+37
    %v1005 = vand.u32 %v780, 2147483648
    %v1006 = vor.u32 1.1754944e-38, %v1005
    %v1007 = vsel %vm1004, %v1006, %v1002
    %v1008 = vmul.f32 %v704, %v1007
    %v1009 = vrcp.pop %v783
    %v1010 = vmul.f32 %v783, %v1009
    %v1011 = vsub.f32 1.0, %v1010
    %v1012 = vmul.f32 %v1009, %v1011
    %v1013 = vadd.f32 %v1009, %v1012
    %vm1014 = vweird.f32 %v783
    %vm1015 = vweird.f32 %v1009
    %vm1016 = vmor %vm1014, %vm1015
    %v1017 = vsel %vm1016, %v1009, %v1013
    %v1018 = vand.u32 2147483647, %v783
    %vm1019 = vcmp.eq.f32.partialorder %v1018, 8.507059e+37
    %v1020 = vand.u32 %v783, 2147483648
    %v1021 = vor.u32 1.1754944e-38, %v1020
    %v1022 = vsel %vm1019, %v1021, %v1017
    %v1023 = vmul.f32 %v706, %v1022
    %v1024 = vrcp.pop %v786
    %v1025 = vmul.f32 %v786, %v1024
    %v1026 = vsub.f32 1.0, %v1025
    %v1027 = vmul.f32 %v1024, %v1026
    %v1028 = vadd.f32 %v1024, %v1027
    %vm1029 = vweird.f32 %v786
    %vm1030 = vweird.f32 %v1024
    %vm1031 = vmor %vm1029, %vm1030
    %v1032 = vsel %vm1031, %v1024, %v1028
    %v1033 = vand.u32 2147483647, %v786
    %vm1034 = vcmp.eq.f32.partialorder %v1033, 8.507059e+37
    %v1035 = vand.u32 %v786, 2147483648
    %v1036 = vor.u32 1.1754944e-38, %v1035
    %v1037 = vsel %vm1034, %v1036, %v1032
    %v1038 = vmul.f32 %v708, %v1037
    %v1039 = vrcp.pop %v789
    %v1040 = vmul.f32 %v789, %v1039
    %v1041 = vsub.f32 1.0, %v1040
    %v1042 = vmul.f32 %v1039, %v1041
    %v1043 = vadd.f32 %v1039, %v1042
    %vm1044 = vweird.f32 %v789
    %vm1045 = vweird.f32 %v1039
    %vm1046 = vmor %vm1044, %vm1045
    %v1047 = vsel %vm1046, %v1039, %v1043
    %v1048 = vand.u32 2147483647, %v789
    %vm1049 = vcmp.eq.f32.partialorder %v1048, 8.507059e+37
    %v1050 = vand.u32 %v789, 2147483648
    %v1051 = vor.u32 1.1754944e-38, %v1050
    %v1052 = vsel %vm1049, %v1051, %v1047
    %v1053 = vmul.f32 %v710, %v1052
    %v1054 = vrcp.pop %v792
    %v1055 = vmul.f32 %v792, %v1054
    %v1056 = vsub.f32 1.0, %v1055
    %v1057 = vmul.f32 %v1054, %v1056
    %v1058 = vadd.f32 %v1054, %v1057
    %vm1059 = vweird.f32 %v792
    %vm1060 = vweird.f32 %v1054
    %vm1061 = vmor %vm1059, %vm1060
    %v1062 = vsel %vm1061, %v1054, %v1058
    %v1063 = vand.u32 2147483647, %v792
    %vm1064 = vcmp.eq.f32.partialorder %v1063, 8.507059e+37
    %v1065 = vand.u32 %v792, 2147483648
    %v1066 = vor.u32 1.1754944e-38, %v1065
    %v1067 = vsel %vm1064, %v1066, %v1062
    %v1068 = vmul.f32 %v712, %v1067
    %v1069 = vrcp.pop %v795
    %v1070 = vmul.f32 %v795, %v1069
    %v1071 = vsub.f32 1.0, %v1070
    %v1072 = vmul.f32 %v1069, %v1071
    %v1073 = vadd.f32 %v1069, %v1072
    %vm1074 = vweird.f32 %v795
    %vm1075 = vweird.f32 %v1069
    %vm1076 = vmor %vm1074, %vm1075
    %v1077 = vsel %vm1076, %v1069, %v1073
    %v1078 = vand.u32 2147483647, %v795
    %vm1079 = vcmp.eq.f32.partialorder %v1078, 8.507059e+37
    %v1080 = vand.u32 %v795, 2147483648
    %v1081 = vor.u32 1.1754944e-38, %v1080
    %v1082 = vsel %vm1079, %v1081, %v1077
    %v1083 = vmul.f32 %v714, %v1082
    %v1084 = vrcp.pop %v798
    %v1085 = vmul.f32 %v798, %v1084
    %v1086 = vsub.f32 1.0, %v1085
    %v1087 = vmul.f32 %v1084, %v1086
    %v1088 = vadd.f32 %v1084, %v1087
    %vm1089 = vweird.f32 %v798
    %vm1090 = vweird.f32 %v1084
    %vm1091 = vmor %vm1089, %vm1090
    %v1092 = vsel %vm1091, %v1084, %v1088
    %v1093 = vand.u32 2147483647, %v798
    %vm1094 = vcmp.eq.f32.partialorder %v1093, 8.507059e+37
    %v1095 = vand.u32 %v798, 2147483648
    %v1096 = vor.u32 1.1754944e-38, %v1095
    %v1097 = vsel %vm1094, %v1096, %v1092
    %v1098 = vmul.f32 %v716, %v1097
    %v1099 = vrcp.pop %v801
    %v1100 = vmul.f32 %v801, %v1099
    %v1101 = vsub.f32 1.0, %v1100
    %v1102 = vmul.f32 %v1099, %v1101
    %v1103 = vadd.f32 %v1099, %v1102
    %vm1104 = vweird.f32 %v801
    %vm1105 = vweird.f32 %v1099
    %vm1106 = vmor %vm1104, %vm1105
    %v1107 = vsel %vm1106, %v1099, %v1103
    %v1108 = vand.u32 2147483647, %v801
    %vm1109 = vcmp.eq.f32.partialorder %v1108, 8.507059e+37
    %v1110 = vand.u32 %v801, 2147483648
    %v1111 = vor.u32 1.1754944e-38, %v1110
    %v1112 = vsel %vm1109, %v1111, %v1107
    %v1113 = vmul.f32 %v718, %v1112
    %v1114 = vrcp.pop %v804
    %v1115 = vmul.f32 %v804, %v1114
    %v1116 = vsub.f32 1.0, %v1115
    %v1117 = vmul.f32 %v1114, %v1116
    %v1118 = vadd.f32 %v1114, %v1117
    %vm1119 = vweird.f32 %v804
    %vm1120 = vweird.f32 %v1114
    %vm1121 = vmor %vm1119, %vm1120
    %v1122 = vsel %vm1121, %v1114, %v1118
    %v1123 = vand.u32 2147483647, %v804
    %vm1124 = vcmp.eq.f32.partialorder %v1123, 8.507059e+37
    %v1125 = vand.u32 %v804, 2147483648
    %v1126 = vor.u32 1.1754944e-38, %v1125
    %v1127 = vsel %vm1124, %v1126, %v1122
    %v1128 = vmul.f32 %v720, %v1127
    %v1129 = vrcp.pop %v807
    %v1130 = vmul.f32 %v807, %v1129
    %v1131 = vsub.f32 1.0, %v1130
    %v1132 = vmul.f32 %v1129, %v1131
    %v1133 = vadd.f32 %v1129, %v1132
    %vm1134 = vweird.f32 %v807
    %vm1135 = vweird.f32 %v1129
    %vm1136 = vmor %vm1134, %vm1135
    %v1137 = vsel %vm1136, %v1129, %v1133
    %v1138 = vand.u32 2147483647, %v807
    %vm1139 = vcmp.eq.f32.partialorder %v1138, 8.507059e+37
    %v1140 = vand.u32 %v807, 2147483648
    %v1141 = vor.u32 1.1754944e-38, %v1140
    %v1142 = vsel %vm1139, %v1141, %v1137
    %v1143 = vmul.f32 %v722, %v1142
    %v1144 = vrcp.pop %v810
    %v1145 = vmul.f32 %v810, %v1144
    %v1146 = vsub.f32 1.0, %v1145
    %v1147 = vmul.f32 %v1144, %v1146
    %v1148 = vadd.f32 %v1144, %v1147
    %vm1149 = vweird.f32 %v810
    %vm1150 = vweird.f32 %v1144
    %vm1151 = vmor %vm1149, %vm1150
    %v1152 = vsel %vm1151, %v1144, %v1148
    %v1153 = vand.u32 2147483647, %v810
    %vm1154 = vcmp.eq.f32.partialorder %v1153, 8.507059e+37
    %v1155 = vand.u32 %v810, 2147483648
    %v1156 = vor.u32 1.1754944e-38, %v1155
    %v1157 = vsel %vm1154, %v1156, %v1152
    %v1158 = vmul.f32 %v724, %v1157
    %v1159 = vrcp.pop %v813
    %v1160 = vmul.f32 %v813, %v1159
    %v1161 = vsub.f32 1.0, %v1160
    %v1162 = vmul.f32 %v1159, %v1161
    %v1163 = vadd.f32 %v1159, %v1162
    %vm1164 = vweird.f32 %v813
    %vm1165 = vweird.f32 %v1159
    %vm1166 = vmor %vm1164, %vm1165
    %v1167 = vsel %vm1166, %v1159, %v1163
    %v1168 = vand.u32 2147483647, %v813
    %vm1169 = vcmp.eq.f32.partialorder %v1168, 8.507059e+37
    %v1170 = vand.u32 %v813, 2147483648
    %v1171 = vor.u32 1.1754944e-38, %v1170
    %v1172 = vsel %vm1169, %v1171, %v1167
    %v1173 = vmul.f32 %v726, %v1172
    %v1174 = vrcp.pop %v816
    %v1175 = vmul.f32 %v816, %v1174
    %v1176 = vsub.f32 1.0, %v1175
    %v1177 = vmul.f32 %v1174, %v1176
    %v1178 = vadd.f32 %v1174, %v1177
    %vm1179 = vweird.f32 %v816
    %vm1180 = vweird.f32 %v1174
    %vm1181 = vmor %vm1179, %vm1180
    %v1182 = vsel %vm1181, %v1174, %v1178
    %v1183 = vand.u32 2147483647, %v816
    %vm1184 = vcmp.eq.f32.partialorder %v1183, 8.507059e+37
    %v1185 = vand.u32 %v816, 2147483648
    %v1186 = vor.u32 1.1754944e-38, %v1185
    %v1187 = vsel %vm1184, %v1186, %v1182
    %v1188 = vmul.f32 %v728, %v1187
    %v1189 = vrcp.pop %v819
    %v1190 = vmul.f32 %v819, %v1189
    %v1191 = vsub.f32 1.0, %v1190
    %v1192 = vmul.f32 %v1189, %v1191
    %v1193 = vadd.f32 %v1189, %v1192
    %vm1194 = vweird.f32 %v819
    %vm1195 = vweird.f32 %v1189
    %vm1196 = vmor %vm1194, %vm1195
    %v1197 = vsel %vm1196, %v1189, %v1193
    %v1198 = vand.u32 2147483647, %v819
    %vm1199 = vcmp.eq.f32.partialorder %v1198, 8.507059e+37
    %v1200 = vand.u32 %v819, 2147483648
    %v1201 = vor.u32 1.1754944e-38, %v1200
    %v1202 = vsel %vm1199, %v1201, %v1197
    %v1203 = vmul.f32 %v730, %v1202
    %v1204 = vrcp.pop %v822
    %v1205 = vmul.f32 %v822, %v1204
    %v1206 = vsub.f32 1.0, %v1205
    %v1207 = vmul.f32 %v1204, %v1206
    %v1208 = vadd.f32 %v1204, %v1207
    %vm1209 = vweird.f32 %v822
    %vm1210 = vweird.f32 %v1204
    %vm1211 = vmor %vm1209, %vm1210
    %v1212 = vsel %vm1211, %v1204, %v1208
    %v1213 = vand.u32 2147483647, %v822
    %vm1214 = vcmp.eq.f32.partialorder %v1213, 8.507059e+37
    %v1215 = vand.u32 %v822, 2147483648
    %v1216 = vor.u32 1.1754944e-38, %v1215
    %v1217 = vsel %vm1214, %v1216, %v1212
    %v1218 = vmul.f32 %v732, %v1217
    %v1219 = vrcp.pop %v825
    %v1220 = vmul.f32 %v825, %v1219
    %v1221 = vsub.f32 1.0, %v1220
    %v1222 = vmul.f32 %v1219, %v1221
    %v1223 = vadd.f32 %v1219, %v1222
    %vm1224 = vweird.f32 %v825
    %vm1225 = vweird.f32 %v1219
    %vm1226 = vmor %vm1224, %vm1225
    %v1227 = vsel %vm1226, %v1219, %v1223
    %v1228 = vand.u32 2147483647, %v825
    %vm1229 = vcmp.eq.f32.partialorder %v1228, 8.507059e+37
    %v1230 = vand.u32 %v825, 2147483648
    %v1231 = vor.u32 1.1754944e-38, %v1230
    %v1232 = vsel %vm1229, %v1231, %v1227
    %v1233 = vmul.f32 %v734, %v1232
    %v1234 = vrcp.pop %v828
    %v1235 = vmul.f32 %v828, %v1234
    %v1236 = vsub.f32 1.0, %v1235
    %v1237 = vmul.f32 %v1234, %v1236
    %v1238 = vadd.f32 %v1234, %v1237
    %vm1239 = vweird.f32 %v828
    %vm1240 = vweird.f32 %v1234
    %vm1241 = vmor %vm1239, %vm1240
    %v1242 = vsel %vm1241, %v1234, %v1238
    %v1243 = vand.u32 2147483647, %v828
    %vm1244 = vcmp.eq.f32.partialorder %v1243, 8.507059e+37
    %v1245 = vand.u32 %v828, 2147483648
    %v1246 = vor.u32 1.1754944e-38, %v1245
    %v1247 = vsel %vm1244, %v1246, %v1242
    %v1248 = vmul.f32 %v736, %v1247
    %v1249 = vrcp.pop %v831
    %v1250 = vmul.f32 %v831, %v1249
    %v1251 = vsub.f32 1.0, %v1250
    %v1252 = vmul.f32 %v1249, %v1251
    %v1253 = vadd.f32 %v1249, %v1252
    %vm1254 = vweird.f32 %v831
    %vm1255 = vweird.f32 %v1249
    %vm1256 = vmor %vm1254, %vm1255
    %v1257 = vsel %vm1256, %v1249, %v1253
    %v1258 = vand.u32 2147483647, %v831
    %vm1259 = vcmp.eq.f32.partialorder %v1258, 8.507059e+37
    %v1260 = vand.u32 %v831, 2147483648
    %v1261 = vor.u32 1.1754944e-38, %v1260
    %v1262 = vsel %vm1259, %v1261, %v1257
    %v1263 = vmul.f32 %v738, %v1262
    %v1264 = vrcp.pop %v834
    %v1265 = vmul.f32 %v834, %v1264
    %v1266 = vsub.f32 1.0, %v1265
    %v1267 = vmul.f32 %v1264, %v1266
    %v1268 = vadd.f32 %v1264, %v1267
    %vm1269 = vweird.f32 %v834
    %vm1270 = vweird.f32 %v1264
    %vm1271 = vmor %vm1269, %vm1270
    %v1272 = vsel %vm1271, %v1264, %v1268
    %v1273 = vand.u32 2147483647, %v834
    %vm1274 = vcmp.eq.f32.partialorder %v1273, 8.507059e+37
    %v1275 = vand.u32 %v834, 2147483648
    %v1276 = vor.u32 1.1754944e-38, %v1275
    %v1277 = vsel %vm1274, %v1276, %v1272
    %v1278 = vmul.f32 %v740, %v1277
    %v1279 = vrcp.pop %v837
    %v1280 = vmul.f32 %v837, %v1279
    %v1281 = vsub.f32 1.0, %v1280
    %v1282 = vmul.f32 %v1279, %v1281
    %v1283 = vadd.f32 %v1279, %v1282
    %vm1284 = vweird.f32 %v837
    %vm1285 = vweird.f32 %v1279
    %vm1286 = vmor %vm1284, %vm1285
    %v1287 = vsel %vm1286, %v1279, %v1283
    %v1288 = vand.u32 2147483647, %v837
    %vm1289 = vcmp.eq.f32.partialorder %v1288, 8.507059e+37
    %v1290 = vand.u32 %v837, 2147483648
    %v1291 = vor.u32 1.1754944e-38, %v1290
    %v1292 = vsel %vm1289, %v1291, %v1287
    %v1293 = vmul.f32 %v742, %v1292
    %v1294 = vrcp.pop %v840
    %v1295 = vmul.f32 %v840, %v1294
    %v1296 = vsub.f32 1.0, %v1295
    %v1297 = vmul.f32 %v1294, %v1296
    %v1298 = vadd.f32 %v1294, %v1297
    %vm1299 = vweird.f32 %v840
    %vm1300 = vweird.f32 %v1294
    %vm1301 = vmor %vm1299, %vm1300
    %v1302 = vsel %vm1301, %v1294, %v1298
    %v1303 = vand.u32 2147483647, %v840
    %vm1304 = vcmp.eq.f32.partialorder %v1303, 8.507059e+37
    %v1305 = vand.u32 %v840, 2147483648
    %v1306 = vor.u32 1.1754944e-38, %v1305
    %v1307 = vsel %vm1304, %v1306, %v1302
    %v1308 = vmul.f32 %v744, %v1307
    %v1309 = vrcp.pop %v843
    %v1310 = vmul.f32 %v843, %v1309
    %v1311 = vsub.f32 1.0, %v1310
    %v1312 = vmul.f32 %v1309, %v1311
    %v1313 = vadd.f32 %v1309, %v1312
    %vm1314 = vweird.f32 %v843
    %vm1315 = vweird.f32 %v1309
    %vm1316 = vmor %vm1314, %vm1315
    %v1317 = vsel %vm1316, %v1309, %v1313
    %v1318 = vand.u32 2147483647, %v843
    %vm1319 = vcmp.eq.f32.partialorder %v1318, 8.507059e+37
    %v1320 = vand.u32 %v843, 2147483648
    %v1321 = vor.u32 1.1754944e-38, %v1320
    %v1322 = vsel %vm1319, %v1321, %v1317
    %v1323 = vmul.f32 %v746, %v1322
    %1325 = vset.pattern.permute.xlu0 0
    %1326 = vperm.xlu0 %1325, %v858
    %v1327 = vpop.permute.xlu0 %1326
    %1330 = vset.pattern.permute.xlu0 0
    %1331 = vperm.xlu0 %1330, %v873
    %v1332 = vpop.permute.xlu0 %1331
    %1335 = vset.pattern.permute.xlu0 0
    %1336 = vperm.xlu0 %1335, %v888
    %v1337 = vpop.permute.xlu0 %1336
    %1340 = vset.pattern.permute.xlu0 0
    %1341 = vperm.xlu0 %1340, %v903
    %v1342 = vpop.permute.xlu0 %1341
    %1345 = vset.pattern.permute.xlu0 0
    %1346 = vperm.xlu0 %1345, %v918
    %v1347 = vpop.permute.xlu0 %1346
    %1350 = vset.pattern.permute.xlu0 0
    %1351 = vperm.xlu0 %1350, %v933
    %v1352 = vpop.permute.xlu0 %1351
    %1355 = vset.pattern.permute.xlu0 0
    %1356 = vperm.xlu0 %1355, %v948
    %v1357 = vpop.permute.xlu0 %1356
    %1360 = vset.pattern.permute.xlu0 0
    %1361 = vperm.xlu0 %1360, %v963
    %v1362 = vpop.permute.xlu0 %1361
    %1365 = vset.pattern.permute.xlu0 0
    %1366 = vperm.xlu0 %1365, %v978
    %v1367 = vpop.permute.xlu0 %1366
    %1370 = vset.pattern.permute.xlu0 0
    %1371 = vperm.xlu0 %1370, %v993
    %v1372 = vpop.permute.xlu0 %1371
    %1375 = vset.pattern.permute.xlu0 0
    %1376 = vperm.xlu0 %1375, %v1008
    %v1377 = vpop.permute.xlu0 %1376
    %1380 = vset.pattern.permute.xlu0 0
    %1381 = vperm.xlu0 %1380, %v1023
    %v1382 = vpop.permute.xlu0 %1381
    %1385 = vset.pattern.permute.xlu0 0
    %1386 = vperm.xlu0 %1385, %v1038
    %v1387 = vpop.permute.xlu0 %1386
    %1390 = vset.pattern.permute.xlu0 0
    %1391 = vperm.xlu0 %1390, %v1053
    %v1392 = vpop.permute.xlu0 %1391
    %1395 = vset.pattern.permute.xlu0 0
    %1396 = vperm.xlu0 %1395, %v1068
    %v1397 = vpop.permute.xlu0 %1396
    %1400 = vset.pattern.permute.xlu0 0
    %1401 = vperm.xlu0 %1400, %v1083
    %v1402 = vpop.permute.xlu0 %1401
    %1405 = vset.pattern.permute.xlu0 0
    %1406 = vperm.xlu0 %1405, %v1098
    %v1407 = vpop.permute.xlu0 %1406
    %1410 = vset.pattern.permute.xlu0 0
    %1411 = vperm.xlu0 %1410, %v1113
    %v1412 = vpop.permute.xlu0 %1411
    %1415 = vset.pattern.permute.xlu0 0
    %1416 = vperm.xlu0 %1415, %v1128
    %v1417 = vpop.permute.xlu0 %1416
    %1420 = vset.pattern.permute.xlu0 0
    %1421 = vperm.xlu0 %1420, %v1143
    %v1422 = vpop.permute.xlu0 %1421
    %1425 = vset.pattern.permute.xlu0 0
    %1426 = vperm.xlu0 %1425, %v1158
    %v1427 = vpop.permute.xlu0 %1426
    %1430 = vset.pattern.permute.xlu0 0
    %1431 = vperm.xlu0 %1430, %v1173
    %v1432 = vpop.permute.xlu0 %1431
    %1435 = vset.pattern.permute.xlu0 0
    %1436 = vperm.xlu0 %1435, %v1188
    %v1437 = vpop.permute.xlu0 %1436
    %1440 = vset.pattern.permute.xlu0 0
    %1441 = vperm.xlu0 %1440, %v1203
    %v1442 = vpop.permute.xlu0 %1441
    %1445 = vset.pattern.permute.xlu0 0
    %1446 = vperm.xlu0 %1445, %v1218
    %v1447 = vpop.permute.xlu0 %1446
    %1450 = vset.pattern.permute.xlu0 0
    %1451 = vperm.xlu0 %1450, %v1233
    %v1452 = vpop.permute.xlu0 %1451
    %1455 = vset.pattern.permute.xlu0 0
    %1456 = vperm.xlu0 %1455, %v1248
    %v1457 = vpop.permute.xlu0 %1456
    %1460 = vset.pattern.permute.xlu0 0
    %1461 = vperm.xlu0 %1460, %v1263
    %v1462 = vpop.permute.xlu0 %1461
    %1465 = vset.pattern.permute.xlu0 0
    %1466 = vperm.xlu0 %1465, %v1278
    %v1467 = vpop.permute.xlu0 %1466
    %1470 = vset.pattern.permute.xlu0 0
    %1471 = vperm.xlu0 %1470, %v1293
    %v1472 = vpop.permute.xlu0 %1471
    %1475 = vset.pattern.permute.xlu0 0
    %1476 = vperm.xlu0 %1475, %v1308
    %v1477 = vpop.permute.xlu0 %1476
    %1480 = vset.pattern.permute.xlu0 0
    %1481 = vperm.xlu0 %1480, %v1323
    %v1482 = vpop.permute.xlu0 %1481
    %v1484 = vmul.f32 %v1327, %v96
    %v1485 = vmul.f32 %v1332, %v97
    %v1486 = vmul.f32 %v1337, %v98
    %v1487 = vmul.f32 %v1342, %v99
    %v1488 = vmul.f32 %v1347, %v100
    %v1489 = vmul.f32 %v1352, %v101
    %v1490 = vmul.f32 %v1357, %v102
    %v1491 = vmul.f32 %v1362, %v103
    %v1492 = vmul.f32 %v1367, %v104
    %v1493 = vmul.f32 %v1372, %v105
    %v1494 = vmul.f32 %v1377, %v106
    %v1495 = vmul.f32 %v1382, %v107
    %v1496 = vmul.f32 %v1387, %v108
    %v1497 = vmul.f32 %v1392, %v109
    %v1498 = vmul.f32 %v1397, %v110
    %v1499 = vmul.f32 %v1402, %v111
    %v1500 = vmul.f32 %v1407, %v112
    %v1501 = vmul.f32 %v1412, %v113
    %v1502 = vmul.f32 %v1417, %v114
    %v1503 = vmul.f32 %v1422, %v115
    %v1504 = vmul.f32 %v1427, %v116
    %v1505 = vmul.f32 %v1432, %v117
    %v1506 = vmul.f32 %v1437, %v118
    %v1507 = vmul.f32 %v1442, %v119
    %v1508 = vmul.f32 %v1447, %v120
    %v1509 = vmul.f32 %v1452, %v121
    %v1510 = vmul.f32 %v1457, %v122
    %v1511 = vmul.f32 %v1462, %v123
    %v1512 = vmul.f32 %v1467, %v124
    %v1513 = vmul.f32 %v1472, %v125
    %v1514 = vmul.f32 %v1477, %v126
    %v1515 = vmul.f32 %v1482, %v127
    %1516 = vset.pattern.permute.xlu0 1
    %1517 = vperm.xlu0 %1516, %v858
    %v1518 = vpop.permute.xlu0 %1517
    %1520 = vset.pattern.permute.xlu0 1
    %1521 = vperm.xlu0 %1520, %v873
    %v1522 = vpop.permute.xlu0 %1521
    %1524 = vset.pattern.permute.xlu0 1
    %1525 = vperm.xlu0 %1524, %v888
    %v1526 = vpop.permute.xlu0 %1525
    %1528 = vset.pattern.permute.xlu0 1
    %1529 = vperm.xlu0 %1528, %v903
    %v1530 = vpop.permute.xlu0 %1529
    %1532 = vset.pattern.permute.xlu0 1
    %1533 = vperm.xlu0 %1532, %v918
    %v1534 = vpop.permute.xlu0 %1533
    %1536 = vset.pattern.permute.xlu0 1
    %1537 = vperm.xlu0 %1536, %v933
    %v1538 = vpop.permute.xlu0 %1537
    %1540 = vset.pattern.permute.xlu0 1
    %1541 = vperm.xlu0 %1540, %v948
    %v1542 = vpop.permute.xlu0 %1541
    %1544 = vset.pattern.permute.xlu0 1
    %1545 = vperm.xlu0 %1544, %v963
    %v1546 = vpop.permute.xlu0 %1545
    %1548 = vset.pattern.permute.xlu0 1
    %1549 = vperm.xlu0 %1548, %v978
    %v1550 = vpop.permute.xlu0 %1549
    %1552 = vset.pattern.permute.xlu0 1
    %1553 = vperm.xlu0 %1552, %v993
    %v1554 = vpop.permute.xlu0 %1553
    %1556 = vset.pattern.permute.xlu0 1
    %1557 = vperm.xlu0 %1556, %v1008
    %v1558 = vpop.permute.xlu0 %1557
    %1560 = vset.pattern.permute.xlu0 1
    %1561 = vperm.xlu0 %1560, %v1023
    %v1562 = vpop.permute.xlu0 %1561
    %1564 = vset.pattern.permute.xlu0 1
    %1565 = vperm.xlu0 %1564, %v1038
    %v1566 = vpop.permute.xlu0 %1565
    %1568 = vset.pattern.permute.xlu0 1
    %1569 = vperm.xlu0 %1568, %v1053
    %v1570 = vpop.permute.xlu0 %1569
    %1572 = vset.pattern.permute.xlu0 1
    %1573 = vperm.xlu0 %1572, %v1068
    %v1574 = vpop.permute.xlu0 %1573
    %1576 = vset.pattern.permute.xlu0 1
    %1577 = vperm.xlu0 %1576, %v1083
    %v1578 = vpop.permute.xlu0 %1577
    %1580 = vset.pattern.permute.xlu0 1
    %1581 = vperm.xlu0 %1580, %v1098
    %v1582 = vpop.permute.xlu0 %1581
    %1584 = vset.pattern.permute.xlu0 1
    %1585 = vperm.xlu0 %1584, %v1113
    %v1586 = vpop.permute.xlu0 %1585
    %1588 = vset.pattern.permute.xlu0 1
    %1589 = vperm.xlu0 %1588, %v1128
    %v1590 = vpop.permute.xlu0 %1589
    %1592 = vset.pattern.permute.xlu0 1
    %1593 = vperm.xlu0 %1592, %v1143
    %v1594 = vpop.permute.xlu0 %1593
    %1596 = vset.pattern.permute.xlu0 1
    %1597 = vperm.xlu0 %1596, %v1158
    %v1598 = vpop.permute.xlu0 %1597
    %1600 = vset.pattern.permute.xlu0 1
    %1601 = vperm.xlu0 %1600, %v1173
    %v1602 = vpop.permute.xlu0 %1601
    %1604 = vset.pattern.permute.xlu0 1
    %1605 = vperm.xlu0 %1604, %v1188
    %v1606 = vpop.permute.xlu0 %1605
    %1608 = vset.pattern.permute.xlu0 1
    %1609 = vperm.xlu0 %1608, %v1203
    %v1610 = vpop.permute.xlu0 %1609
    %1612 = vset.pattern.permute.xlu0 1
    %1613 = vperm.xlu0 %1612, %v1218
    %v1614 = vpop.permute.xlu0 %1613
    %1616 = vset.pattern.permute.xlu0 1
    %1617 = vperm.xlu0 %1616, %v1233
    %v1618 = vpop.permute.xlu0 %1617
    %1620 = vset.pattern.permute.xlu0 1
    %1621 = vperm.xlu0 %1620, %v1248
    %v1622 = vpop.permute.xlu0 %1621
    %1624 = vset.pattern.permute.xlu0 1
    %1625 = vperm.xlu0 %1624, %v1263
    %v1626 = vpop.permute.xlu0 %1625
    %1628 = vset.pattern.permute.xlu0 1
    %1629 = vperm.xlu0 %1628, %v1278
    %v1630 = vpop.permute.xlu0 %1629
    %1632 = vset.pattern.permute.xlu0 1
    %1633 = vperm.xlu0 %1632, %v1293
    %v1634 = vpop.permute.xlu0 %1633
    %1636 = vset.pattern.permute.xlu0 1
    %1637 = vperm.xlu0 %1636, %v1308
    %v1638 = vpop.permute.xlu0 %1637
    %1640 = vset.pattern.permute.xlu0 1
    %1641 = vperm.xlu0 %1640, %v1323
    %v1642 = vpop.permute.xlu0 %1641
    %v1644 = vmul.f32 %v1518, %v259
    %v1645 = vmul.f32 %v1522, %v260
    %v1646 = vmul.f32 %v1526, %v261
    %v1647 = vmul.f32 %v1530, %v262
    %v1648 = vmul.f32 %v1534, %v263
    %v1649 = vmul.f32 %v1538, %v264
    %v1650 = vmul.f32 %v1542, %v265
    %v1651 = vmul.f32 %v1546, %v266
    %v1652 = vmul.f32 %v1550, %v267
    %v1653 = vmul.f32 %v1554, %v268
    %v1654 = vmul.f32 %v1558, %v269
    %v1655 = vmul.f32 %v1562, %v270
    %v1656 = vmul.f32 %v1566, %v271
    %v1657 = vmul.f32 %v1570, %v272
    %v1658 = vmul.f32 %v1574, %v273
    %v1659 = vmul.f32 %v1578, %v274
    %v1660 = vmul.f32 %v1582, %v275
    %v1661 = vmul.f32 %v1586, %v276
    %v1662 = vmul.f32 %v1590, %v277
    %v1663 = vmul.f32 %v1594, %v278
    %v1664 = vmul.f32 %v1598, %v279
    %v1665 = vmul.f32 %v1602, %v280
    %v1666 = vmul.f32 %v1606, %v281
    %v1667 = vmul.f32 %v1610, %v282
    %v1668 = vmul.f32 %v1614, %v283
    %v1669 = vmul.f32 %v1618, %v284
    %v1670 = vmul.f32 %v1622, %v285
    %v1671 = vmul.f32 %v1626, %v286
    %v1672 = vmul.f32 %v1630, %v287
    %v1673 = vmul.f32 %v1634, %v288
    %v1674 = vmul.f32 %v1638, %v289
    %v1675 = vmul.f32 %v1642, %v290
    %v1676 = vadd.f32 %v1484, %v1644
    %v1677 = vadd.f32 %v1485, %v1645
    %v1678 = vadd.f32 %v1486, %v1646
    %v1679 = vadd.f32 %v1487, %v1647
    %v1680 = vadd.f32 %v1488, %v1648
    %v1681 = vadd.f32 %v1489, %v1649
    %v1682 = vadd.f32 %v1490, %v1650
    %v1683 = vadd.f32 %v1491, %v1651
    %v1684 = vadd.f32 %v1492, %v1652
    %v1685 = vadd.f32 %v1493, %v1653
    %v1686 = vadd.f32 %v1494, %v1654
    %v1687 = vadd.f32 %v1495, %v1655
    %v1688 = vadd.f32 %v1496, %v1656
    %v1689 = vadd.f32 %v1497, %v1657
    %v1690 = vadd.f32 %v1498, %v1658
    %v1691 = vadd.f32 %v1499, %v1659
    %v1692 = vadd.f32 %v1500, %v1660
    %v1693 = vadd.f32 %v1501, %v1661
    %v1694 = vadd.f32 %v1502, %v1662
    %v1695 = vadd.f32 %v1503, %v1663
    %v1696 = vadd.f32 %v1504, %v1664
    %v1697 = vadd.f32 %v1505, %v1665
    %v1698 = vadd.f32 %v1506, %v1666
    %v1699 = vadd.f32 %v1507, %v1667
    %v1700 = vadd.f32 %v1508, %v1668
    %v1701 = vadd.f32 %v1509, %v1669
    %v1702 = vadd.f32 %v1510, %v1670
    %v1703 = vadd.f32 %v1511, %v1671
    %v1704 = vadd.f32 %v1512, %v1672
    %v1705 = vadd.f32 %v1513, %v1673
    %v1706 = vadd.f32 %v1514, %v1674
    %v1707 = vadd.f32 %v1515, %v1675
    %1708 = vset.pattern.permute.xlu0 2
    %1709 = vperm.xlu0 %1708, %v858
    %v1710 = vpop.permute.xlu0 %1709
    %1712 = vset.pattern.permute.xlu0 2
    %1713 = vperm.xlu0 %1712, %v873
    %v1714 = vpop.permute.xlu0 %1713
    %1716 = vset.pattern.permute.xlu0 2
    %1717 = vperm.xlu0 %1716, %v888
    %v1718 = vpop.permute.xlu0 %1717
    %1720 = vset.pattern.permute.xlu0 2
    %1721 = vperm.xlu0 %1720, %v903
    %v1722 = vpop.permute.xlu0 %1721
    %1724 = vset.pattern.permute.xlu0 2
    %1725 = vperm.xlu0 %1724, %v918
    %v1726 = vpop.permute.xlu0 %1725
    %1728 = vset.pattern.permute.xlu0 2
    %1729 = vperm.xlu0 %1728, %v933
    %v1730 = vpop.permute.xlu0 %1729
    %1732 = vset.pattern.permute.xlu0 2
    %1733 = vperm.xlu0 %1732, %v948
    %v1734 = vpop.permute.xlu0 %1733
    %1736 = vset.pattern.permute.xlu0 2
    %1737 = vperm.xlu0 %1736, %v963
    %v1738 = vpop.permute.xlu0 %1737
    %1740 = vset.pattern.permute.xlu0 2
    %1741 = vperm.xlu0 %1740, %v978
    %v1742 = vpop.permute.xlu0 %1741
    %1744 = vset.pattern.permute.xlu0 2
    %1745 = vperm.xlu0 %1744, %v993
    %v1746 = vpop.permute.xlu0 %1745
    %1748 = vset.pattern.permute.xlu0 2
    %1749 = vperm.xlu0 %1748, %v1008
    %v1750 = vpop.permute.xlu0 %1749
    %1752 = vset.pattern.permute.xlu0 2
    %1753 = vperm.xlu0 %1752, %v1023
    %v1754 = vpop.permute.xlu0 %1753
    %1756 = vset.pattern.permute.xlu0 2
    %1757 = vperm.xlu0 %1756, %v1038
    %v1758 = vpop.permute.xlu0 %1757
    %1760 = vset.pattern.permute.xlu0 2
    %1761 = vperm.xlu0 %1760, %v1053
    %v1762 = vpop.permute.xlu0 %1761
    %1764 = vset.pattern.permute.xlu0 2
    %1765 = vperm.xlu0 %1764, %v1068
    %v1766 = vpop.permute.xlu0 %1765
    %1768 = vset.pattern.permute.xlu0 2
    %1769 = vperm.xlu0 %1768, %v1083
    %v1770 = vpop.permute.xlu0 %1769
    %1772 = vset.pattern.permute.xlu0 2
    %1773 = vperm.xlu0 %1772, %v1098
    %v1774 = vpop.permute.xlu0 %1773
    %1776 = vset.pattern.permute.xlu0 2
    %1777 = vperm.xlu0 %1776, %v1113
    %v1778 = vpop.permute.xlu0 %1777
    %1780 = vset.pattern.permute.xlu0 2
    %1781 = vperm.xlu0 %1780, %v1128
    %v1782 = vpop.permute.xlu0 %1781
    %1784 = vset.pattern.permute.xlu0 2
    %1785 = vperm.xlu0 %1784, %v1143
    %v1786 = vpop.permute.xlu0 %1785
    %1788 = vset.pattern.permute.xlu0 2
    %1789 = vperm.xlu0 %1788, %v1158
    %v1790 = vpop.permute.xlu0 %1789
    %1792 = vset.pattern.permute.xlu0 2
    %1793 = vperm.xlu0 %1792, %v1173
    %v1794 = vpop.permute.xlu0 %1793
    %1796 = vset.pattern.permute.xlu0 2
    %1797 = vperm.xlu0 %1796, %v1188
    %v1798 = vpop.permute.xlu0 %1797
    %1800 = vset.pattern.permute.xlu0 2
    %1801 = vperm.xlu0 %1800, %v1203
    %v1802 = vpop.permute.xlu0 %1801
    %1804 = vset.pattern.permute.xlu0 2
    %1805 = vperm.xlu0 %1804, %v1218
    %v1806 = vpop.permute.xlu0 %1805
    %1808 = vset.pattern.permute.xlu0 2
    %1809 = vperm.xlu0 %1808, %v1233
    %v1810 = vpop.permute.xlu0 %1809
    %1812 = vset.pattern.permute.xlu0 2
    %1813 = vperm.xlu0 %1812, %v1248
    %v1814 = vpop.permute.xlu0 %1813
    %1816 = vset.pattern.permute.xlu0 2
    %1817 = vperm.xlu0 %1816, %v1263
    %v1818 = vpop.permute.xlu0 %1817
    %1820 = vset.pattern.permute.xlu0 2
    %1821 = vperm.xlu0 %1820, %v1278
    %v1822 = vpop.permute.xlu0 %1821
    %1824 = vset.pattern.permute.xlu0 2
    %1825 = vperm.xlu0 %1824, %v1293
    %v1826 = vpop.permute.xlu0 %1825
    %1828 = vset.pattern.permute.xlu0 2
    %1829 = vperm.xlu0 %1828, %v1308
    %v1830 = vpop.permute.xlu0 %1829
    %1832 = vset.pattern.permute.xlu0 2
    %1833 = vperm.xlu0 %1832, %v1323
    %v1834 = vpop.permute.xlu0 %1833
    %v1836 = vmul.f32 %v1710, %v422
    %v1837 = vmul.f32 %v1714, %v423
    %v1838 = vmul.f32 %v1718, %v424
    %v1839 = vmul.f32 %v1722, %v425
    %v1840 = vmul.f32 %v1726, %v426
    %v1841 = vmul.f32 %v1730, %v427
    %v1842 = vmul.f32 %v1734, %v428
    %v1843 = vmul.f32 %v1738, %v429
    %v1844 = vmul.f32 %v1742, %v430
    %v1845 = vmul.f32 %v1746, %v431
    %v1846 = vmul.f32 %v1750, %v432
    %v1847 = vmul.f32 %v1754, %v433
    %v1848 = vmul.f32 %v1758, %v434
    %v1849 = vmul.f32 %v1762, %v435
    %v1850 = vmul.f32 %v1766, %v436
    %v1851 = vmul.f32 %v1770, %v437
    %v1852 = vmul.f32 %v1774, %v438
    %v1853 = vmul.f32 %v1778, %v439
    %v1854 = vmul.f32 %v1782, %v440
    %v1855 = vmul.f32 %v1786, %v441
    %v1856 = vmul.f32 %v1790, %v442
    %v1857 = vmul.f32 %v1794, %v443
    %v1858 = vmul.f32 %v1798, %v444
    %v1859 = vmul.f32 %v1802, %v445
    %v1860 = vmul.f32 %v1806, %v446
    %v1861 = vmul.f32 %v1810, %v447
    %v1862 = vmul.f32 %v1814, %v448
    %v1863 = vmul.f32 %v1818, %v449
    %v1864 = vmul.f32 %v1822, %v450
    %v1865 = vmul.f32 %v1826, %v451
    %v1866 = vmul.f32 %v1830, %v452
    %v1867 = vmul.f32 %v1834, %v453
    %v1868 = vadd.f32 %v1676, %v1836
    %v1869 = vadd.f32 %v1677, %v1837
    %v1870 = vadd.f32 %v1678, %v1838
    %v1871 = vadd.f32 %v1679, %v1839
    %v1872 = vadd.f32 %v1680, %v1840
    %v1873 = vadd.f32 %v1681, %v1841
    %v1874 = vadd.f32 %v1682, %v1842
    %v1875 = vadd.f32 %v1683, %v1843
    %v1876 = vadd.f32 %v1684, %v1844
    %v1877 = vadd.f32 %v1685, %v1845
    %v1878 = vadd.f32 %v1686, %v1846
    %v1879 = vadd.f32 %v1687, %v1847
    %v1880 = vadd.f32 %v1688, %v1848
    %v1881 = vadd.f32 %v1689, %v1849
    %v1882 = vadd.f32 %v1690, %v1850
    %v1883 = vadd.f32 %v1691, %v1851
    %v1884 = vadd.f32 %v1692, %v1852
    %v1885 = vadd.f32 %v1693, %v1853
    %v1886 = vadd.f32 %v1694, %v1854
    %v1887 = vadd.f32 %v1695, %v1855
    %v1888 = vadd.f32 %v1696, %v1856
    %v1889 = vadd.f32 %v1697, %v1857
    %v1890 = vadd.f32 %v1698, %v1858
    %v1891 = vadd.f32 %v1699, %v1859
    %v1892 = vadd.f32 %v1700, %v1860
    %v1893 = vadd.f32 %v1701, %v1861
    %v1894 = vadd.f32 %v1702, %v1862
    %v1895 = vadd.f32 %v1703, %v1863
    %v1896 = vadd.f32 %v1704, %v1864
    %v1897 = vadd.f32 %v1705, %v1865
    %v1898 = vadd.f32 %v1706, %v1866
    %v1899 = vadd.f32 %v1707, %v1867
    %1900 = vst [vmem:[#allocation12] sm:$0xff] %v1868
    %1901 = vst [vmem:[#allocation12 + $0x8] sm:$0xff] %v1869
    %1902 = vst [vmem:[#allocation12 + $0x10] sm:$0xff] %v1870
    %1903 = vst [vmem:[#allocation12 + $0x18] sm:$0xff] %v1871
    %1904 = vst [vmem:[#allocation12 + $0x20] sm:$0xff] %v1872
    %1905 = vst [vmem:[#allocation12 + $0x28] sm:$0xff] %v1873
    %1906 = vst [vmem:[#allocation12 + $0x30] sm:$0xff] %v1874
    %1907 = vst [vmem:[#allocation12 + $0x38] sm:$0xff] %v1875
    %1908 = vst [vmem:[#allocation12 + $0x40] sm:$0xff] %v1876
    %1909 = vst [vmem:[#allocation12 + $0x48] sm:$0xff] %v1877
    %1910 = vst [vmem:[#allocation12 + $0x50] sm:$0xff] %v1878
    %1911 = vst [vmem:[#allocation12 + $0x58] sm:$0xff] %v1879
    %1912 = vst [vmem:[#allocation12 + $0x60] sm:$0xff] %v1880
    %1913 = vst [vmem:[#allocation12 + $0x68] sm:$0xff] %v1881
    %1914 = vst [vmem:[#allocation12 + $0x70] sm:$0xff] %v1882
    %1915 = vst [vmem:[#allocation12 + $0x78] sm:$0xff] %v1883
    %1916 = vst [vmem:[#allocation12 + $0x80] sm:$0xff] %v1884
    %1917 = vst [vmem:[#allocation12 + $0x88] sm:$0xff] %v1885
    %1918 = vst [vmem:[#allocation12 + $0x90] sm:$0xff] %v1886
    %1919 = vst [vmem:[#allocation12 + $0x98] sm:$0xff] %v1887
    %1920 = vst [vmem:[#allocation12 + $0xa0] sm:$0xff] %v1888
    %1921 = vst [vmem:[#allocation12 + $0xa8] sm:$0xff] %v1889
    %1922 = vst [vmem:[#allocation12 + $0xb0] sm:$0xff] %v1890
    %1923 = vst [vmem:[#allocation12 + $0xb8] sm:$0xff] %v1891
    %1924 = vst [vmem:[#allocation12 + $0xc0] sm:$0xff] %v1892
    %1925 = vst [vmem:[#allocation12 + $0xc8] sm:$0xff] %v1893
    %1926 = vst [vmem:[#allocation12 + $0xd0] sm:$0xff] %v1894
    %1927 = vst [vmem:[#allocation12 + $0xd8] sm:$0xff] %v1895
    %1928 = vst [vmem:[#allocation12 + $0xe0] sm:$0xff] %v1896
    %1929 = vst [vmem:[#allocation12 + $0xe8] sm:$0xff] %v1897
    %1930 = vst [vmem:[#allocation12 + $0xf0] sm:$0xff] %v1898
    %1931 = vst [vmem:[#allocation12 + $0xf8] sm:$0xff] %v1899
    // Predicated region
    $region42: #{tpu_custom_call.1} parent=1 // pred_check
      _
    $region43: #{tpu_custom_call.1} parent=1 // pred_check_branch
      %1933 = sbr.rel (0) target = $region45
    $region44: #{tpu_custom_call.1} parent=1 // pred_region
      %1935 = vsyncadd [#allocation4], 0
      %s1936 = sshll.u32 [#allocation12], 4
      %s1937 = int_to_ptr.vmem [resolvable:$true] %s1936
      %s1938 = sshll.u32 %s5, 4
      %s1939 = int_to_ptr.hbm [resolvable:$true] %s1938
      %1944 = dma.vmem_to_hbm [thread:$0]  %s1937, 4096, %s1939, [#allocation4], 128, 128, 8
    $region45: #{tpu_custom_call.1} parent=1 // pred_fallthru
      _
    // Predicated region
    $region46: #{tpu_custom_call.1} parent=1 // pred_check
      _
    $region47: #{tpu_custom_call.1} parent=1 // pred_check_branch
      %1946 = sbr.rel (0) target = $region49
    $region48: #{tpu_custom_call.1} parent=1 // pred_region
      %1948 = dma.done [#allocation4], 4096
    $region49: #{tpu_custom_call.1} parent=1 // pred_fallthru
      _
    %1949 = vsyncpa [#allocation3], 1
    %1950 = vsyncpa [#allocation8], 1
    %1951 = vsyncpa [#allocation11], 1
    %1952 = vsyncpa [#allocation4], 1
    %1953 = vsyncpa [#allocation5], 1

</llo_original>
